<compile_context>
chip_gen: v7x
topology: tpu7x:2x2x1
jax: 0.10.0
libtpu: 0.0.40
codegen_flags: <defaults>
</compile_context>

<pallas_src>
import functools

import jax
import jax.numpy as jnp
from jax.experimental import pallas as pl
from jax.experimental.pallas import tpu as pltpu


def _shd_encoder_fc_kernel(x_ref, wdT_ref, wtT_ref, bt_ref, wcT_ref,
                           w1T_ref, b1_ref, w2T_ref, b2_ref, out_ref,
                           *, T, TB, N, O, H, K1, K2):
    """Fused STSC (dimension=2, SE gate) + FC head for one batch tile.

    x_ref   : [T, TB, N]   input (time, batch-tile, channels)
    wdT_ref : [K1, N]      depthwise temporal-conv taps (tap-major)
    wtT_ref : [K2, N, O]   recv_T Conv1d taps, pre-transposed per tap
    bt_ref  : [1, O]       recv_T bias
    wcT_ref : [O, N]       recv_C Linear weight, transposed
    w1T_ref : [N, H]       fc Linear(700->128) weight, transposed
    b1_ref  : [1, H]
    w2T_ref : [H, H]       fc Linear(128->128) weight, transposed
    b2_ref  : [1, H]
    out_ref : [T, TB, H]
    """
    f32 = jnp.float32
    x = x_ref[...].astype(f32)                            # [T, TB, N]

    p1 = (K1 - 1) // 2                                    # temporal-conv halo
    p2 = (K2 - 1) // 2                                    # attention-conv halo
    zpad = jnp.zeros((p1, TB, N), f32)
    xp = jnp.concatenate([zpad, x, zpad], axis=0)         # [T + 2*p1, TB, N]

    # --- STSC_Temporal_Conv: depthwise Conv1d over time (VPU mul-adds) -----
    wdT = wdT_ref[...].astype(f32)                        # [K1, N]
    xc = xp[0:T] * wdT[0][None, None, :]
    for k in range(1, K1):                                # static -> unrolled
        xc = xc + xp[k:k + T] * wdT[k][None, None, :]

    # --- STSC_Attention.recv_T: dense Conv1d(N->O, K2 taps, bias) ----------
    # Each tap is a lane-dense [T*TB, N] x [N, O] MXU matmul on a
    # time-shifted view of the padded input.
    off = p1 - p2
    R = T * TB
    s = jnp.dot(xp[off:off + T].reshape(R, N),
                wtT_ref[0].astype(f32), preferred_element_type=f32)
    for k in range(1, K2):
        s = s + jnp.dot(xp[off + k:off + k + T].reshape(R, N),
                        wtT_ref[k].astype(f32), preferred_element_type=f32)
    s = s + bt_ref[...].astype(f32)                       # [R, O]

    # --- recv_C: ReLU -> Linear(O->N, no bias); gate D = 1 - sigmoid -------
    h = jnp.maximum(s, 0.0)
    a = jnp.dot(h, wcT_ref[...].astype(f32), preferred_element_type=f32)
    d = 1.0 / (1.0 + jnp.exp(a))                          # == 1 - sigmoid(a)

    y = xc.reshape(R, N) * d                              # gated filtered out

    # --- fc head: Linear(N->H) + ReLU + Linear(H->H) + ReLU ----------------
    z1 = jnp.maximum(
        jnp.dot(y, w1T_ref[...].astype(f32), preferred_element_type=f32)
        + b1_ref[...].astype(f32), 0.0)                   # [R, H]
    z2 = jnp.maximum(
        jnp.dot(z1, w2T_ref[...].astype(f32), preferred_element_type=f32)
        + b2_ref[...].astype(f32), 0.0)                   # [R, H]

    out_ref[...] = z2.reshape(T, TB, H).astype(out_ref.dtype)


def shd_encoder_fc_forward(x, params, *, batch_tile=8, vmem_limit_bytes=None):
    """SHD_Encoder forward (net='FC', attention='STSC', SE gate).

    x: [T, B, N].  params (torch layouts):
       'wd' [N, K1]            STSC_Temporal_Conv depthwise weight (squeezed)
       'wt' [O, N, K2], 'bt' [O]   STSC_Attention.recv_T Conv1d
       'wc' [N, O]             STSC_Attention.recv_C Linear (no bias)
       'w1' [H, N], 'b1' [H], 'w2' [H, H], 'b2' [H]   fc Linears
    returns: [T, B, H] float32
    """
    T, B, N = x.shape
    wd, wt, bt, wc = params['wd'], params['wt'], params['bt'], params['wc']
    w1, b1, w2, b2 = params['w1'], params['b1'], params['w2'], params['b2']
    K1 = wd.shape[1]
    O, _, K2 = wt.shape
    H = w1.shape[0]

    # Batch tile: keep it a multiple of 8 (sublane count) so the in-kernel
    # [T,TB,N] <-> [T*TB,N] reshapes are relayout-free.
    TB = batch_tile
    if B % TB != 0:
        TB = B                      # fall back to a single batch tile
    grid = (B // TB,)

    # Pre-transpose weights ONCE so every in-kernel matmul contracts over the
    # lane axis of the activations and writes a lane-dense output.
    wdT = jnp.transpose(wd, (1, 0)).astype(jnp.float32)        # [K1, N]
    wtT = jnp.transpose(wt, (2, 1, 0)).astype(jnp.float32)     # [K2, N, O]
    btr = bt.reshape(1, O).astype(jnp.float32)
    wcT = jnp.transpose(wc, (1, 0)).astype(jnp.float32)        # [O, N]
    w1T = jnp.transpose(w1, (1, 0)).astype(jnp.float32)        # [N, H]
    b1r = b1.reshape(1, H).astype(jnp.float32)
    w2T = jnp.transpose(w2, (1, 0)).astype(jnp.float32)        # [H, H]
    b2r = b2.reshape(1, H).astype(jnp.float32)

    kernel = functools.partial(_shd_encoder_fc_kernel,
                               T=T, TB=TB, N=N, O=O, H=H, K1=K1, K2=K2)

    return pl.pallas_call(
        kernel,
        out_shape=jax.ShapeDtypeStruct((T, B, H), jnp.float32),
        grid=grid,
        in_specs=[
            pl.BlockSpec((T, TB, N), lambda i: (0, i, 0)),   # x  (batch-tiled)
            pl.BlockSpec((K1, N), lambda i: (0, 0)),         # wdT (resident)
            pl.BlockSpec((K2, N, O), lambda i: (0, 0, 0)),   # wtT (resident)
            pl.BlockSpec((1, O), lambda i: (0, 0)),          # bt
            pl.BlockSpec((O, N), lambda i: (0, 0)),          # wcT
            pl.BlockSpec((N, H), lambda i: (0, 0)),          # w1T
            pl.BlockSpec((1, H), lambda i: (0, 0)),          # b1
            pl.BlockSpec((H, H), lambda i: (0, 0)),          # w2T
            pl.BlockSpec((1, H), lambda i: (0, 0)),          # b2
        ],
        out_specs=pl.BlockSpec((T, TB, H), lambda i: (0, i, 0)),
        compiler_params=pltpu.CompilerParams(
            dimension_semantics=("parallel",),
            vmem_limit_bytes=vmem_limit_bytes),
    )(x.astype(jnp.float32), wdT, wtT, btr, wcT, w1T, b1r, w2T, b2r)


def _reference(x, params):
    """Pure-JAX mirror of the torch SHD_Encoder FC+STSC(SE) forward."""
    wd, wt, bt, wc = params['wd'], params['wt'], params['bt'], params['wc']
    w1, b1, w2, b2 = params['w1'], params['b1'], params['w2'], params['b2']
    T, B, N = x.shape
    K1 = wd.shape[1]
    O, _, K2 = wt.shape
    p1 = (K1 - 1) // 2
    p2 = (K2 - 1) // 2
    hp = jax.lax.Precision.HIGHEST

    xp1 = jnp.pad(x, ((p1, p1), (0, 0), (0, 0)))
    xc = sum(xp1[k:k + T] * wd[:, k][None, None, :] for k in range(K1))

    xp2 = jnp.pad(x, ((p2, p2), (0, 0), (0, 0)))
    s = bt[None, None, :] + sum(
        jnp.einsum('tbn,on->tbo', xp2[k:k + T], wt[:, :, k], precision=hp)
        for k in range(K2))
    h = jax.nn.relu(s)
    a = jnp.einsum('tbo,no->tbn', h, wc, precision=hp)
    d = 1.0 - jax.nn.sigmoid(a)
    y = xc * d

    z1 = jax.nn.relu(jnp.einsum('tbn,hn->tbh', y, w1, precision=hp) + b1)
    z2 = jax.nn.relu(jnp.einsum('tbh,gh->tbg', z1, w2, precision=hp) + b2)
    return z2


if __name__ == "__main__":
    # Small shapes consistent with SHD_Encoder's FC branch.  Real model:
    # N=700 channels, H=128 hidden, time_rf_conv=5, time_rf_at=3,
    # reduction=1 (so O == N).  Scaled-down test sizes:
    T, B, N, H = 8, 16, 64, 32
    K1, K2 = 5, 3            # time_rf_conv, time_rf_at
    O = N                    # reduction = 1

    key = jax.random.PRNGKey(0)
    ks = jax.random.split(key, 9)
    sc = lambda k, shape, fan: (jax.random.normal(k, shape, jnp.float32)
                                / jnp.sqrt(jnp.float32(fan)))

    x = jax.random.normal(ks[0], (T, B, N), dtype=jnp.float32)
    params = {
        'wd': sc(ks[1], (N, K1), K1),          # depthwise temporal conv
        'wt': sc(ks[2], (O, N, K2), N * K2),   # recv_T Conv1d weight
        'bt': sc(ks[3], (O,), 1.0),            # recv_T bias
        'wc': sc(ks[4], (N, O), O),            # recv_C Linear (no bias)
        'w1': sc(ks[5], (H, N), N),            # fc Linear(700 -> 128)
        'b1': sc(ks[6], (H,), 1.0),
        'w2': sc(ks[7], (H, H), H),            # fc Linear(128 -> 128)
        'b2': sc(ks[8], (H,), 1.0),
    }

    out = shd_encoder_fc_forward(x, params, batch_tile=8)
    out = jax.block_until_ready(out)
    ref = _reference(x, params)

    assert out.shape == (T, B, H), out.shape
    assert jnp.allclose(out, ref, atol=2e-3, rtol=2e-3), (
        float(jnp.max(jnp.abs(out - ref))))
    print("KERNEL_OK")
</pallas_src>

<mosaic_0001>
module attributes {stable_mosaic.version = 11 : i64} {
  func.func @_shd_encoder_fc_kernel(%arg0: i32, %arg1: memref<8x8x64xf32, #tpu.memory_space<vmem>>, %arg2: memref<5x64xf32, #tpu.memory_space<vmem>>, %arg3: memref<3x64x64xf32, #tpu.memory_space<vmem>>, %arg4: memref<1x64xf32, #tpu.memory_space<vmem>>, %arg5: memref<64x64xf32, #tpu.memory_space<vmem>>, %arg6: memref<64x32xf32, #tpu.memory_space<vmem>>, %arg7: memref<1x32xf32, #tpu.memory_space<vmem>>, %arg8: memref<32x32xf32, #tpu.memory_space<vmem>>, %arg9: memref<1x32xf32, #tpu.memory_space<vmem>>, %arg10: memref<8x8x32xf32, #tpu.memory_space<vmem>>) attributes {dimension_semantics = [#tpu.dimension_semantics<parallel>], iteration_bounds = array<i64: 2>, scalar_prefetch = 0 : i64, scratch_operands = 0 : i64, tpu.core_type = #tpu.core_type<tc>, window_params = [{transform_indices = @transform_0, window_bounds = array<i64: 8, 8, 64>}, {pipeline_mode = #tpu.pipeline_mode<synchronous>, transform_indices = @transform_1, window_bounds = array<i64: 5, 64>}, {pipeline_mode = #tpu.pipeline_mode<synchronous>, transform_indices = @transform_2, window_bounds = array<i64: 3, 64, 64>}, {pipeline_mode = #tpu.pipeline_mode<synchronous>, transform_indices = @transform_3, window_bounds = array<i64: 1, 64>}, {pipeline_mode = #tpu.pipeline_mode<synchronous>, transform_indices = @transform_4, window_bounds = array<i64: 64, 64>}, {pipeline_mode = #tpu.pipeline_mode<synchronous>, transform_indices = @transform_5, window_bounds = array<i64: 64, 32>}, {pipeline_mode = #tpu.pipeline_mode<synchronous>, transform_indices = @transform_6, window_bounds = array<i64: 1, 32>}, {pipeline_mode = #tpu.pipeline_mode<synchronous>, transform_indices = @transform_7, window_bounds = array<i64: 32, 32>}, {pipeline_mode = #tpu.pipeline_mode<synchronous>, transform_indices = @transform_8, window_bounds = array<i64: 1, 32>}, {transform_indices = @transform_9, window_bounds = array<i64: 8, 8, 32>}]} {
    %c0 = arith.constant 0 : index
    %c0_0 = arith.constant 0 : index
    %c0_1 = arith.constant 0 : index
    %0 = vector.load %arg1[%c0, %c0_0, %c0_1] : memref<8x8x64xf32, #tpu.memory_space<vmem>>, vector<8x8x64xf32>
    %cst = arith.constant 0.000000e+00 : f32
    %1 = vector.broadcast %cst : f32 to vector<2x8x64xf32>
    %2 = tpu.concatenate %1, %0, %1 in 0 : vector<2x8x64xf32>, vector<8x8x64xf32>, vector<2x8x64xf32> -> vector<12x8x64xf32>
    %c0_2 = arith.constant 0 : index
    %c0_3 = arith.constant 0 : index
    %3 = vector.load %arg2[%c0_2, %c0_3] : memref<5x64xf32, #tpu.memory_space<vmem>>, vector<5x64xf32>
    %4 = vector.extract_strided_slice %2 {offsets = [0, 0, 0], sizes = [8, 8, 64], strides = [1, 1, 1]} : vector<12x8x64xf32> to vector<8x8x64xf32>
    %5 = vector.extract_strided_slice %3 {offsets = [0, 0], sizes = [1, 64], strides = [1, 1]} : vector<5x64xf32> to vector<1x64xf32>
    %6 = vector.shape_cast %5 : vector<1x64xf32> to vector<64xf32>
    %7 = vector.shape_cast %6 : vector<64xf32> to vector<1x1x64xf32>
    %8 = vector.broadcast %7 : vector<1x1x64xf32> to vector<8x8x64xf32>
    %9 = arith.mulf %4, %8 : vector<8x8x64xf32>
    %10 = vector.extract_strided_slice %2 {offsets = [1, 0, 0], sizes = [8, 8, 64], strides = [1, 1, 1]} : vector<12x8x64xf32> to vector<8x8x64xf32>
    %11 = vector.extract_strided_slice %3 {offsets = [1, 0], sizes = [1, 64], strides = [1, 1]} : vector<5x64xf32> to vector<1x64xf32>
    %12 = vector.shape_cast %11 : vector<1x64xf32> to vector<64xf32>
    %13 = vector.shape_cast %12 : vector<64xf32> to vector<1x1x64xf32>
    %14 = vector.broadcast %13 : vector<1x1x64xf32> to vector<8x8x64xf32>
    %15 = arith.mulf %10, %14 : vector<8x8x64xf32>
    %16 = arith.addf %9, %15 : vector<8x8x64xf32>
    %17 = vector.extract_strided_slice %2 {offsets = [2, 0, 0], sizes = [8, 8, 64], strides = [1, 1, 1]} : vector<12x8x64xf32> to vector<8x8x64xf32>
    %18 = vector.extract_strided_slice %3 {offsets = [2, 0], sizes = [1, 64], strides = [1, 1]} : vector<5x64xf32> to vector<1x64xf32>
    %19 = vector.shape_cast %18 : vector<1x64xf32> to vector<64xf32>
    %20 = vector.shape_cast %19 : vector<64xf32> to vector<1x1x64xf32>
    %21 = vector.broadcast %20 : vector<1x1x64xf32> to vector<8x8x64xf32>
    %22 = arith.mulf %17, %21 : vector<8x8x64xf32>
    %23 = arith.addf %16, %22 : vector<8x8x64xf32>
    %24 = vector.extract_strided_slice %2 {offsets = [3, 0, 0], sizes = [8, 8, 64], strides = [1, 1, 1]} : vector<12x8x64xf32> to vector<8x8x64xf32>
    %25 = vector.extract_strided_slice %3 {offsets = [3, 0], sizes = [1, 64], strides = [1, 1]} : vector<5x64xf32> to vector<1x64xf32>
    %26 = vector.shape_cast %25 : vector<1x64xf32> to vector<64xf32>
    %27 = vector.shape_cast %26 : vector<64xf32> to vector<1x1x64xf32>
    %28 = vector.broadcast %27 : vector<1x1x64xf32> to vector<8x8x64xf32>
    %29 = arith.mulf %24, %28 : vector<8x8x64xf32>
    %30 = arith.addf %23, %29 : vector<8x8x64xf32>
    %31 = vector.extract_strided_slice %2 {offsets = [4, 0, 0], sizes = [8, 8, 64], strides = [1, 1, 1]} : vector<12x8x64xf32> to vector<8x8x64xf32>
    %32 = vector.extract_strided_slice %3 {offsets = [4, 0], sizes = [1, 64], strides = [1, 1]} : vector<5x64xf32> to vector<1x64xf32>
    %33 = vector.shape_cast %32 : vector<1x64xf32> to vector<64xf32>
    %34 = vector.shape_cast %33 : vector<64xf32> to vector<1x1x64xf32>
    %35 = vector.broadcast %34 : vector<1x1x64xf32> to vector<8x8x64xf32>
    %36 = arith.mulf %31, %35 : vector<8x8x64xf32>
    %37 = arith.addf %30, %36 : vector<8x8x64xf32>
    %38 = vector.extract_strided_slice %2 {offsets = [1, 0, 0], sizes = [8, 8, 64], strides = [1, 1, 1]} : vector<12x8x64xf32> to vector<8x8x64xf32>
    %39 = vector.shape_cast %38 : vector<8x8x64xf32> to vector<64x64xf32>
    %c0_4 = arith.constant 0 : index
    %c0_5 = arith.constant 0 : index
    %c0_6 = arith.constant 0 : index
    %40 = vector.load %arg3[%c0_4, %c0_5, %c0_6] : memref<3x64x64xf32, #tpu.memory_space<vmem>>, vector<1x64x64xf32>
    %41 = vector.shape_cast %40 : vector<1x64x64xf32> to vector<64x64xf32>
    %cst_7 = arith.constant dense<0.000000e+00> : vector<64x64xf32>
    %42 = tpu.matmul %39, %41, %cst_7 {dimension_numbers = #tpu.dot_dimension_numbers<[1], [0], [0], [1], [0, 0, 1, 1], [], []>} : vector<64x64xf32>, vector<64x64xf32>, vector<64x64xf32> -> vector<64x64xf32>
    %43 = vector.extract_strided_slice %2 {offsets = [2, 0, 0], sizes = [8, 8, 64], strides = [1, 1, 1]} : vector<12x8x64xf32> to vector<8x8x64xf32>
    %44 = vector.shape_cast %43 : vector<8x8x64xf32> to vector<64x64xf32>
    %c1 = arith.constant 1 : index
    %c0_8 = arith.constant 0 : index
    %c0_9 = arith.constant 0 : index
    %45 = vector.load %arg3[%c1, %c0_8, %c0_9] : memref<3x64x64xf32, #tpu.memory_space<vmem>>, vector<1x64x64xf32>
    %46 = vector.shape_cast %45 : vector<1x64x64xf32> to vector<64x64xf32>
    %cst_10 = arith.constant dense<0.000000e+00> : vector<64x64xf32>
    %47 = tpu.matmul %44, %46, %cst_10 {dimension_numbers = #tpu.dot_dimension_numbers<[1], [0], [0], [1], [0, 0, 1, 1], [], []>} : vector<64x64xf32>, vector<64x64xf32>, vector<64x64xf32> -> vector<64x64xf32>
    %48 = arith.addf %42, %47 : vector<64x64xf32>
    %49 = vector.extract_strided_slice %2 {offsets = [3, 0, 0], sizes = [8, 8, 64], strides = [1, 1, 1]} : vector<12x8x64xf32> to vector<8x8x64xf32>
    %50 = vector.shape_cast %49 : vector<8x8x64xf32> to vector<64x64xf32>
    %c2 = arith.constant 2 : index
    %c0_11 = arith.constant 0 : index
    %c0_12 = arith.constant 0 : index
    %51 = vector.load %arg3[%c2, %c0_11, %c0_12] : memref<3x64x64xf32, #tpu.memory_space<vmem>>, vector<1x64x64xf32>
    %52 = vector.shape_cast %51 : vector<1x64x64xf32> to vector<64x64xf32>
    %cst_13 = arith.constant dense<0.000000e+00> : vector<64x64xf32>
    %53 = tpu.matmul %50, %52, %cst_13 {dimension_numbers = #tpu.dot_dimension_numbers<[1], [0], [0], [1], [0, 0, 1, 1], [], []>} : vector<64x64xf32>, vector<64x64xf32>, vector<64x64xf32> -> vector<64x64xf32>
    %54 = arith.addf %48, %53 : vector<64x64xf32>
    %c0_14 = arith.constant 0 : index
    %c0_15 = arith.constant 0 : index
    %55 = vector.load %arg4[%c0_14, %c0_15] : memref<1x64xf32, #tpu.memory_space<vmem>>, vector<1x64xf32>
    %56 = vector.broadcast %55 : vector<1x64xf32> to vector<64x64xf32>
    %57 = arith.addf %54, %56 : vector<64x64xf32>
    %cst_16 = arith.constant 0.000000e+00 : f32
    %58 = vector.broadcast %cst_16 : f32 to vector<64x64xf32>
    %59 = arith.maximumf %57, %58 : vector<64x64xf32>
    %c0_17 = arith.constant 0 : index
    %c0_18 = arith.constant 0 : index
    %60 = vector.load %arg5[%c0_17, %c0_18] : memref<64x64xf32, #tpu.memory_space<vmem>>, vector<64x64xf32>
    %cst_19 = arith.constant dense<0.000000e+00> : vector<64x64xf32>
    %61 = tpu.matmul %59, %60, %cst_19 {dimension_numbers = #tpu.dot_dimension_numbers<[1], [0], [0], [1], [0, 0, 1, 1], [], []>} : vector<64x64xf32>, vector<64x64xf32>, vector<64x64xf32> -> vector<64x64xf32>
    %62 = math.exp %61 : vector<64x64xf32>
    %cst_20 = arith.constant 1.000000e+00 : f32
    %63 = vector.broadcast %cst_20 : f32 to vector<64x64xf32>
    %64 = arith.addf %63, %62 : vector<64x64xf32>
    %cst_21 = arith.constant 1.000000e+00 : f32
    %65 = vector.broadcast %cst_21 : f32 to vector<64x64xf32>
    %66 = arith.divf %65, %64 : vector<64x64xf32>
    %67 = vector.shape_cast %37 : vector<8x8x64xf32> to vector<64x64xf32>
    %68 = arith.mulf %67, %66 : vector<64x64xf32>
    %c0_22 = arith.constant 0 : index
    %c0_23 = arith.constant 0 : index
    %69 = vector.load %arg6[%c0_22, %c0_23] : memref<64x32xf32, #tpu.memory_space<vmem>>, vector<64x32xf32>
    %cst_24 = arith.constant dense<0.000000e+00> : vector<64x32xf32>
    %70 = tpu.matmul %68, %69, %cst_24 {dimension_numbers = #tpu.dot_dimension_numbers<[1], [0], [0], [1], [0, 0, 1, 1], [], []>} : vector<64x64xf32>, vector<64x32xf32>, vector<64x32xf32> -> vector<64x32xf32>
    %c0_25 = arith.constant 0 : index
    %c0_26 = arith.constant 0 : index
    %71 = vector.load %arg7[%c0_25, %c0_26] : memref<1x32xf32, #tpu.memory_space<vmem>>, vector<1x32xf32>
    %72 = vector.broadcast %71 : vector<1x32xf32> to vector<64x32xf32>
    %73 = arith.addf %70, %72 : vector<64x32xf32>
    %cst_27 = arith.constant 0.000000e+00 : f32
    %74 = vector.broadcast %cst_27 : f32 to vector<64x32xf32>
    %75 = arith.maximumf %73, %74 : vector<64x32xf32>
    %c0_28 = arith.constant 0 : index
    %c0_29 = arith.constant 0 : index
    %76 = vector.load %arg8[%c0_28, %c0_29] : memref<32x32xf32, #tpu.memory_space<vmem>>, vector<32x32xf32>
    %cst_30 = arith.constant dense<0.000000e+00> : vector<64x32xf32>
    %77 = tpu.matmul %75, %76, %cst_30 {dimension_numbers = #tpu.dot_dimension_numbers<[1], [0], [0], [1], [0, 0, 1, 1], [], []>} : vector<64x32xf32>, vector<32x32xf32>, vector<64x32xf32> -> vector<64x32xf32>
    %c0_31 = arith.constant 0 : index
    %c0_32 = arith.constant 0 : index
    %78 = vector.load %arg9[%c0_31, %c0_32] : memref<1x32xf32, #tpu.memory_space<vmem>>, vector<1x32xf32>
    %79 = vector.broadcast %78 : vector<1x32xf32> to vector<64x32xf32>
    %80 = arith.addf %77, %79 : vector<64x32xf32>
    %cst_33 = arith.constant 0.000000e+00 : f32
    %81 = vector.broadcast %cst_33 : f32 to vector<64x32xf32>
    %82 = arith.maximumf %80, %81 : vector<64x32xf32>
    %83 = vector.shape_cast %82 : vector<64x32xf32> to vector<8x8x32xf32>
    %c0_34 = arith.constant 0 : index
    %c0_35 = arith.constant 0 : index
    %c0_36 = arith.constant 0 : index
    %84 = vector.load %arg10[%c0_34, %c0_35, %c0_36] : memref<8x8x32xf32, #tpu.memory_space<vmem>>, vector<8x8x32xf32>
    tpu.vector_store %arg10[%c0_34, %c0_35, %c0_36], %83 {strides = array<i32>} : memref<8x8x32xf32, #tpu.memory_space<vmem>>, vector<8x8x32xf32>,
    return
  }
  func.func @transform_0(%arg0: i32) -> (i32, i32, i32) {
    %c0_i32 = arith.constant 0 : i32
    %c0_i32_0 = arith.constant 0 : i32
    %c0_i32_1 = arith.constant 0 : i32
    return %c0_i32, %arg0, %c0_i32_0 : i32, i32, i32
  }
  func.func @transform_1(%arg0: i32) -> (i32, i32) {
    %c0_i32 = arith.constant 0 : i32
    %c0_i32_0 = arith.constant 0 : i32
    %c0_i32_1 = arith.constant 0 : i32
    return %c0_i32, %c0_i32_0 : i32, i32
  }
  func.func @transform_2(%arg0: i32) -> (i32, i32, i32) {
    %c0_i32 = arith.constant 0 : i32
    %c0_i32_0 = arith.constant 0 : i32
    %c0_i32_1 = arith.constant 0 : i32
    %c0_i32_2 = arith.constant 0 : i32
    return %c0_i32, %c0_i32_0, %c0_i32_1 : i32, i32, i32
  }
  func.func @transform_3(%arg0: i32) -> (i32, i32) {
    %c0_i32 = arith.constant 0 : i32
    %c0_i32_0 = arith.constant 0 : i32
    %c0_i32_1 = arith.constant 0 : i32
    return %c0_i32, %c0_i32_0 : i32, i32
  }
  func.func @transform_4(%arg0: i32) -> (i32, i32) {
    %c0_i32 = arith.constant 0 : i32
    %c0_i32_0 = arith.constant 0 : i32
    %c0_i32_1 = arith.constant 0 : i32
    return %c0_i32, %c0_i32_0 : i32, i32
  }
  func.func @transform_5(%arg0: i32) -> (i32, i32) {
    %c0_i32 = arith.constant 0 : i32
    %c0_i32_0 = arith.constant 0 : i32
    %c0_i32_1 = arith.constant 0 : i32
    return %c0_i32, %c0_i32_0 : i32, i32
  }
  func.func @transform_6(%arg0: i32) -> (i32, i32) {
    %c0_i32 = arith.constant 0 : i32
    %c0_i32_0 = arith.constant 0 : i32
    %c0_i32_1 = arith.constant 0 : i32
    return %c0_i32, %c0_i32_0 : i32, i32
  }
  func.func @transform_7(%arg0: i32) -> (i32, i32) {
    %c0_i32 = arith.constant 0 : i32
    %c0_i32_0 = arith.constant 0 : i32
    %c0_i32_1 = arith.constant 0 : i32
    return %c0_i32, %c0_i32_0 : i32, i32
  }
  func.func @transform_8(%arg0: i32) -> (i32, i32) {
    %c0_i32 = arith.constant 0 : i32
    %c0_i32_0 = arith.constant 0 : i32
    %c0_i32_1 = arith.constant 0 : i32
    return %c0_i32, %c0_i32_0 : i32, i32
  }
  func.func @transform_9(%arg0: i32) -> (i32, i32, i32) {
    %c0_i32 = arith.constant 0 : i32
    %c0_i32_0 = arith.constant 0 : i32
    %c0_i32_1 = arith.constant 0 : i32
    return %c0_i32, %arg0, %c0_i32_0 : i32, i32, i32
  }
}

</mosaic_0001>

<llo_original>
// kernel: tpu_custom_call.1
$region0: #{tpu_custom_call.1}
  #allocation0 [shape = 'u32[]', space=smem, size = 0x4, offset = 0x4, fixed_abs, tag = 'smem constant byte address 0x4 - core index']
  #allocation1 [shape = 'u32[144,128]{1,0:T(1,128)}', space=vmem, size = 0x12000, scoped, tag = 'internal scratch']
  %s0 = inlined_call_operand.hbm [shape: f32[8,16,64], index: 0, kind: input, shape index: {}]
  %s1 = inlined_call_operand.vmem [shape: f32[5,64], index: 1, kind: input, shape index: {}]
  %s2 = inlined_call_operand.hbm [shape: f32[3,64,64], index: 2, kind: input, shape index: {}]
  %s3 = inlined_call_operand.vmem [shape: f32[1,64], index: 3, kind: input, shape index: {}]
  %s4 = inlined_call_operand.vmem [shape: f32[64,64], index: 4, kind: input, shape index: {}]
  %s5 = inlined_call_operand.vmem [shape: f32[64,32], index: 5, kind: input, shape index: {}]
  %s6 = inlined_call_operand.vmem [shape: f32[1,32], index: 6, kind: input, shape index: {}]
  %s7 = inlined_call_operand.vmem [shape: f32[32,32], index: 7, kind: input, shape index: {}]
  %s8 = inlined_call_operand.vmem [shape: f32[1,32], index: 8, kind: input, shape index: {}]
  %s9 = inlined_call_operand.hbm [shape: f32[8,16,32], index: 9, kind: output, shape index: {}]
  %s10 = sld [smem:[#allocation0]]
  $region77: #{tpu_custom_call.1} parent=0
    _
  %s12 = ssub.s32 1, %s10
  %s13 = scalar_select 0, %s12, %s10
  $region1: #{tpu_custom_call.1} parent=0
    #allocation2 [shape = 'u8[65536]{0}', space=vmem, size = 0x10000, scoped, tag = 'input window, operand 0']
    #allocation3 [shape = 's32[2]{0}', space=sflag, size = 0x8, scoped, tag = 'scoped memory for tpu_custom_call.1']
    #allocation4 [shape = 's32[2]{0}', space=sflag, size = 0x8, scoped, tag = 'scoped memory for tpu_custom_call.1']
    #allocation5 [shape = 'u8[98304]{0}', space=vmem, size = 0x18000, scoped, tag = 'input window, operand 2, single buffered']
    #allocation6 [shape = 's32[1]{0}', space=sflag, size = 0x4, scoped, tag = 'scoped memory for tpu_custom_call.1']
    #allocation7 [shape = 'u8[65536]{0}', space=vmem, size = 0x10000, scoped, tag = 'output window, operand 0']
    %14 = vsyncpa [#allocation3], 0
    %s15 = scalar_lea.sflag [#allocation3], 1
    %16 = vsyncpa %s15, 0
    %17 = vsyncpa [#allocation6], 0
    %18 = vsyncpa [#allocation4], 0
    %s19 = scalar_lea.sflag [#allocation4], 1
    %20 = vsyncpa %s19, 0
    loop: start=0, step=1, limit=4
    $region2: #{tpu_custom_call.1} parent=1 // loop_pre_header
      _
    $region3: #{tpu_custom_call.1} parent=1 // loop_header
      %s22 = sphi 0, %s26
      %p23 = scmp.ge.s32.totalorder %s22, 4
      %s32 = sphi 0, %s34
      %s35 = sphi 0, %s32
      %s36 = sphi 0, %s35
      %s52 = sphi 0, %s36
      %s56 = sphi 0, %s56
      %s58 = sphi 0, %s56
      %s59 = sphi 0, %s58
      %s73 = sphi 0, %s59
      %s77 = sphi 0, %s77
      %s79 = sphi 0, %s77
      %s80 = sphi 0, %s79
      %s94 = sphi 0, %s80
      %s98 = sphi 0, %s98
      %s100 = sphi 0, %s98
      %s101 = sphi 0, %s100
      %s115 = sphi 0, %s101
      %s119 = sphi 0, %s119
      %s121 = sphi 0, %s119
      %s122 = sphi 0, %s121
      %s136 = sphi 0, %s122
      %s140 = sphi 0, %s140
      %s142 = sphi 0, %s140
      %s143 = sphi 0, %s142
      %s157 = sphi 0, %s143
      %s161 = sphi 0, %s161
      %s163 = sphi 0, %s161
      %s164 = sphi 0, %s163
      %s178 = sphi 0, %s164
      %s182 = sphi 0, %s182
      %s184 = sphi 0, %s182
      %s185 = sphi 0, %s184
      %s199 = sphi 0, %s185
      %s203 = sphi 0, %s203
      %s205 = sphi 0, %s203
      %s206 = sphi 0, %s205
      %s220 = sphi 0, %s206
      %s226 = sphi 0, %s228
      %s229 = sphi 0, %s226
      %s230 = sphi 0, %s229
      %s246 = sphi 0, %s230
    $region4: #{tpu_custom_call.1} parent=1 // loop_header_branch
      %25 = sbr.rel (%p23) target = $region8
    $region5: #{tpu_custom_call.1} parent=1 // loop_body
      %s27 = ssub.s32 %s22, 1
      %s28 = ssub.s32 %s22, 2
      %s29 = sadd.s32 %s22, 1
      %s30 = ssub.s32 %s22, %s29
      %p31 = scmp.eq.s32.totalorder %s30, 0
      %s33 = sadd.s32 %s32, 1
      %s34 = scalar_select %p31, %s32, %s33
      %p37 = pneg %p31
      %p38 = scmp.eq.s32.totalorder %s22, 1
      %p39 = por %p37, %p38
      %p40 = scmp.ne.s32.totalorder %s32, %s35
      %p41 = scmp.eq.s32.totalorder %s22, 0
      %p42 = por %p40, %p41
      %p43 = scmp.ne.s32.totalorder %s32, %s35
      %p44 = scmp.eq.s32.totalorder %s27, 1
      %p45 = por %p43, %p44
      %p46 = scmp.ne.s32.totalorder %s35, %s36
      %p47 = scmp.eq.s32.totalorder %s27, 0
      %p48 = por %p46, %p47
      %p49 = scmp.ne.s32.totalorder %s35, %s36
      %p50 = scmp.eq.s32.totalorder %s28, 1
      %p51 = por %p49, %p50
      %p53 = scmp.ne.s32.totalorder %s36, %s52
      %p54 = scmp.eq.s32.totalorder %s28, 0
      %p55 = por %p53, %p54
      %s57 = sadd.s32 %s56, 1
      %p60 = scmp.eq.s32.totalorder %s22, 1
      %p61 = scmp.ne.s32.totalorder %s56, %s58
      %p62 = scmp.eq.s32.totalorder %s22, 0
      %p63 = por %p61, %p62
      %p64 = scmp.ne.s32.totalorder %s56, %s58
      %p65 = scmp.eq.s32.totalorder %s27, 1
      %p66 = por %p64, %p65
      %p67 = scmp.ne.s32.totalorder %s58, %s59
      %p68 = scmp.eq.s32.totalorder %s27, 0
      %p69 = por %p67, %p68
      %p70 = scmp.ne.s32.totalorder %s58, %s59
      %p71 = scmp.eq.s32.totalorder %s28, 1
      %p72 = por %p70, %p71
      %p74 = scmp.ne.s32.totalorder %s59, %s73
      %p75 = scmp.eq.s32.totalorder %s28, 0
      %p76 = por %p74, %p75
      %s78 = sadd.s32 %s77, 1
      %p81 = scmp.eq.s32.totalorder %s22, 1
      %p82 = scmp.ne.s32.totalorder %s77, %s79
      %p83 = scmp.eq.s32.totalorder %s22, 0
      %p84 = por %p82, %p83
      %p85 = scmp.ne.s32.totalorder %s77, %s79
      %p86 = scmp.eq.s32.totalorder %s27, 1
      %p87 = por %p85, %p86
      %p88 = scmp.ne.s32.totalorder %s79, %s80
      %p89 = scmp.eq.s32.totalorder %s27, 0
      %p90 = por %p88, %p89
      %p91 = scmp.ne.s32.totalorder %s79, %s80
      %p92 = scmp.eq.s32.totalorder %s28, 1
      %p93 = por %p91, %p92
      %p95 = scmp.ne.s32.totalorder %s80, %s94
      %p96 = scmp.eq.s32.totalorder %s28, 0
      %p97 = por %p95, %p96
      %s99 = sadd.s32 %s98, 1
      %p102 = scmp.eq.s32.totalorder %s22, 1
      %p103 = scmp.ne.s32.totalorder %s98, %s100
      %p104 = scmp.eq.s32.totalorder %s22, 0
      %p105 = por %p103, %p104
      %p106 = scmp.ne.s32.totalorder %s98, %s100
      %p107 = scmp.eq.s32.totalorder %s27, 1
      %p108 = por %p106, %p107
      %p109 = scmp.ne.s32.totalorder %s100, %s101
      %p110 = scmp.eq.s32.totalorder %s27, 0
      %p111 = por %p109, %p110
      %p112 = scmp.ne.s32.totalorder %s100, %s101
      %p113 = scmp.eq.s32.totalorder %s28, 1
      %p114 = por %p112, %p113
      %p116 = scmp.ne.s32.totalorder %s101, %s115
      %p117 = scmp.eq.s32.totalorder %s28, 0
      %p118 = por %p116, %p117
      %s120 = sadd.s32 %s119, 1
      %p123 = scmp.eq.s32.totalorder %s22, 1
      %p124 = scmp.ne.s32.totalorder %s119, %s121
      %p125 = scmp.eq.s32.totalorder %s22, 0
      %p126 = por %p124, %p125
      %p127 = scmp.ne.s32.totalorder %s119, %s121
      %p128 = scmp.eq.s32.totalorder %s27, 1
      %p129 = por %p127, %p128
      %p130 = scmp.ne.s32.totalorder %s121, %s122
      %p131 = scmp.eq.s32.totalorder %s27, 0
      %p132 = por %p130, %p131
      %p133 = scmp.ne.s32.totalorder %s121, %s122
      %p134 = scmp.eq.s32.totalorder %s28, 1
      %p135 = por %p133, %p134
      %p137 = scmp.ne.s32.totalorder %s122, %s136
      %p138 = scmp.eq.s32.totalorder %s28, 0
      %p139 = por %p137, %p138
      %s141 = sadd.s32 %s140, 1
      %p144 = scmp.eq.s32.totalorder %s22, 1
      %p145 = scmp.ne.s32.totalorder %s140, %s142
      %p146 = scmp.eq.s32.totalorder %s22, 0
      %p147 = por %p145, %p146
      %p148 = scmp.ne.s32.totalorder %s140, %s142
      %p149 = scmp.eq.s32.totalorder %s27, 1
      %p150 = por %p148, %p149
      %p151 = scmp.ne.s32.totalorder %s142, %s143
      %p152 = scmp.eq.s32.totalorder %s27, 0
      %p153 = por %p151, %p152
      %p154 = scmp.ne.s32.totalorder %s142, %s143
      %p155 = scmp.eq.s32.totalorder %s28, 1
      %p156 = por %p154, %p155
      %p158 = scmp.ne.s32.totalorder %s143, %s157
      %p159 = scmp.eq.s32.totalorder %s28, 0
      %p160 = por %p158, %p159
      %s162 = sadd.s32 %s161, 1
      %p165 = scmp.eq.s32.totalorder %s22, 1
      %p166 = scmp.ne.s32.totalorder %s161, %s163
      %p167 = scmp.eq.s32.totalorder %s22, 0
      %p168 = por %p166, %p167
      %p169 = scmp.ne.s32.totalorder %s161, %s163
      %p170 = scmp.eq.s32.totalorder %s27, 1
      %p171 = por %p169, %p170
      %p172 = scmp.ne.s32.totalorder %s163, %s164
      %p173 = scmp.eq.s32.totalorder %s27, 0
      %p174 = por %p172, %p173
      %p175 = scmp.ne.s32.totalorder %s163, %s164
      %p176 = scmp.eq.s32.totalorder %s28, 1
      %p177 = por %p175, %p176
      %p179 = scmp.ne.s32.totalorder %s164, %s178
      %p180 = scmp.eq.s32.totalorder %s28, 0
      %p181 = por %p179, %p180
      %s183 = sadd.s32 %s182, 1
      %p186 = scmp.eq.s32.totalorder %s22, 1
      %p187 = scmp.ne.s32.totalorder %s182, %s184
      %p188 = scmp.eq.s32.totalorder %s22, 0
      %p189 = por %p187, %p188
      %p190 = scmp.ne.s32.totalorder %s182, %s184
      %p191 = scmp.eq.s32.totalorder %s27, 1
      %p192 = por %p190, %p191
      %p193 = scmp.ne.s32.totalorder %s184, %s185
      %p194 = scmp.eq.s32.totalorder %s27, 0
      %p195 = por %p193, %p194
      %p196 = scmp.ne.s32.totalorder %s184, %s185
      %p197 = scmp.eq.s32.totalorder %s28, 1
      %p198 = por %p196, %p197
      %p200 = scmp.ne.s32.totalorder %s185, %s199
      %p201 = scmp.eq.s32.totalorder %s28, 0
      %p202 = por %p200, %p201
      %s204 = sadd.s32 %s203, 1
      %p207 = scmp.eq.s32.totalorder %s22, 1
      %p208 = scmp.ne.s32.totalorder %s203, %s205
      %p209 = scmp.eq.s32.totalorder %s22, 0
      %p210 = por %p208, %p209
      %p211 = scmp.ne.s32.totalorder %s203, %s205
      %p212 = scmp.eq.s32.totalorder %s27, 1
      %p213 = por %p211, %p212
      %p214 = scmp.ne.s32.totalorder %s205, %s206
      %p215 = scmp.eq.s32.totalorder %s27, 0
      %p216 = por %p214, %p215
      %p217 = scmp.ne.s32.totalorder %s205, %s206
      %p218 = scmp.eq.s32.totalorder %s28, 1
      %p219 = por %p217, %p218
      %p221 = scmp.ne.s32.totalorder %s206, %s220
      %p222 = scmp.eq.s32.totalorder %s28, 0
      %p223 = por %p221, %p222
      %s224 = ssub.s32 %s22, %s29
      %p225 = scmp.eq.s32.totalorder %s224, 0
      %s227 = sadd.s32 %s226, 1
      %s228 = scalar_select %p225, %s226, %s227
      %p231 = pneg %p225
      %p232 = scmp.eq.s32.totalorder %s22, 1
      %p233 = por %p231, %p232
      %p234 = scmp.ne.s32.totalorder %s226, %s229
      %p235 = scmp.eq.s32.totalorder %s22, 0
      %p236 = por %p234, %p235
      %p237 = scmp.ne.s32.totalorder %s226, %s229
      %p238 = scmp.eq.s32.totalorder %s27, 1
      %p239 = por %p237, %p238
      %p240 = scmp.ne.s32.totalorder %s229, %s230
      %p241 = scmp.eq.s32.totalorder %s27, 0
      %p242 = por %p240, %p241
      %p243 = scmp.ne.s32.totalorder %s229, %s230
      %p244 = scmp.eq.s32.totalorder %s28, 1
      %p245 = por %p243, %p244
      %p247 = scmp.ne.s32.totalorder %s230, %s246
      %p248 = scmp.eq.s32.totalorder %s28, 0
      %p249 = por %p247, %p248
      %p250 = scmp.le.s32.totalorder 1, %s22
      %p251 = scmp.lt.s32.totalorder %s22, 3
      %p252 = pnand %p250, %p251
      %p253 = pneg %p252
      // Predicated region
      $region9: #{tpu_custom_call.1} parent=5 // pred_check
        _
      $region10: #{tpu_custom_call.1} parent=5 // pred_check_branch
        %255 = sbr.rel (%p252) target = $region12
      $region11: #{tpu_custom_call.1} parent=5 // pred_region
        %s256 = ssub.s32 %s22, 1
        // Predicated region
        $region13: #{tpu_custom_call.1} parent=11 // pred_check
          %p257 = pneg %p69
        $region14: #{tpu_custom_call.1} parent=11 // pred_check_branch
          %259 = sbr.rel (%p257) target = $region16
        $region15: #{tpu_custom_call.1} parent=11 // pred_region
          _
        $region16: #{tpu_custom_call.1} parent=11 // pred_fallthru
          _
        // Predicated region
        $region17: #{tpu_custom_call.1} parent=11 // pred_check
          %p260 = pneg %p90
        $region18: #{tpu_custom_call.1} parent=11 // pred_check_branch
          %262 = sbr.rel (%p260) target = $region20
        $region19: #{tpu_custom_call.1} parent=11 // pred_region
          %s264 = ssub.s32 3072, 3072
          %265 = vsyncadd [#allocation6], %s264
          %s266 = sshll.u32 [#allocation5], 4
          %s267 = int_to_ptr.vmem [resolvable:$true] %s266
          %272 = dma.hbm_to_vmem [thread:$0]  %s2, 3072, %s267, [#allocation6], 128, 128, 8
        $region20: #{tpu_custom_call.1} parent=11 // pred_fallthru
          _
        // Predicated region
        $region21: #{tpu_custom_call.1} parent=11 // pred_check
          %p273 = pneg %p111
        $region22: #{tpu_custom_call.1} parent=11 // pred_check_branch
          %275 = sbr.rel (%p273) target = $region24
        $region23: #{tpu_custom_call.1} parent=11 // pred_region
          _
        $region24: #{tpu_custom_call.1} parent=11 // pred_fallthru
          _
        // Predicated region
        $region25: #{tpu_custom_call.1} parent=11 // pred_check
          %p276 = pneg %p132
        $region26: #{tpu_custom_call.1} parent=11 // pred_check_branch
          %278 = sbr.rel (%p276) target = $region28
        $region27: #{tpu_custom_call.1} parent=11 // pred_region
          _
        $region28: #{tpu_custom_call.1} parent=11 // pred_fallthru
          _
        // Predicated region
        $region29: #{tpu_custom_call.1} parent=11 // pred_check
          %p279 = pneg %p153
        $region30: #{tpu_custom_call.1} parent=11 // pred_check_branch
          %281 = sbr.rel (%p279) target = $region32
        $region31: #{tpu_custom_call.1} parent=11 // pred_region
          _
        $region32: #{tpu_custom_call.1} parent=11 // pred_fallthru
          _
        // Predicated region
        $region33: #{tpu_custom_call.1} parent=11 // pred_check
          %p282 = pneg %p174
        $region34: #{tpu_custom_call.1} parent=11 // pred_check_branch
          %284 = sbr.rel (%p282) target = $region36
        $region35: #{tpu_custom_call.1} parent=11 // pred_region
          _
        $region36: #{tpu_custom_call.1} parent=11 // pred_fallthru
          _
        // Predicated region
        $region37: #{tpu_custom_call.1} parent=11 // pred_check
          %p285 = pneg %p195
        $region38: #{tpu_custom_call.1} parent=11 // pred_check_branch
          %287 = sbr.rel (%p285) target = $region40
        $region39: #{tpu_custom_call.1} parent=11 // pred_region
          _
        $region40: #{tpu_custom_call.1} parent=11 // pred_fallthru
          _
        // Predicated region
        $region41: #{tpu_custom_call.1} parent=11 // pred_check
          %p288 = pneg %p216
        $region42: #{tpu_custom_call.1} parent=11 // pred_check_branch
          %290 = sbr.rel (%p288) target = $region44
        $region43: #{tpu_custom_call.1} parent=11 // pred_region
          _
        $region44: #{tpu_custom_call.1} parent=11 // pred_fallthru
          _
      $region12: #{tpu_custom_call.1} parent=5 // pred_fallthru
        _
      %p291 = scmp.lt.s32.totalorder %s22, 2
      // Predicated region
      $region45: #{tpu_custom_call.1} parent=5 // pred_check
        %p292 = pneg %p291
      $region46: #{tpu_custom_call.1} parent=5 // pred_check_branch
        %294 = sbr.rel (%p292) target = $region48
      $region47: #{tpu_custom_call.1} parent=5 // pred_region
        // Predicated region
        $region49: #{tpu_custom_call.1} parent=47 // pred_check
          %p295 = pneg %p42
        $region50: #{tpu_custom_call.1} parent=47 // pred_check_branch
          %297 = sbr.rel (%p295) target = $region52
        $region51: #{tpu_custom_call.1} parent=47 // pred_region
          %s298 = sand.u32 %s32, 1
          %s299 = scalar_lea.sflag [#allocation3], %s298
          %s300 = sand.u32 %s32, 1
          %s301 = smul.addr %s300, 64
          %s302 = scalar_lea.vmem [#allocation2], %s301
          %s304 = ssub.s32 1024, 1024
          %305 = vsyncadd %s299, %s304
          %s306 = smul.addr %s22, 128
          %s307 = scalar_lea.hbm %s0, %s306
          %s308 = sshll.u32 %s302, 4
          %s309 = int_to_ptr.vmem [resolvable:$true] %s308
          %314 = dma.hbm_to_vmem [thread:$0]  %s307, 1024, %s309, %s299, 256, 128, 8
        $region52: #{tpu_custom_call.1} parent=47 // pred_fallthru
          _
      $region48: #{tpu_custom_call.1} parent=5 // pred_fallthru
        _
      %p315 = scmp.le.s32.totalorder 1, %s22
      %p316 = scmp.lt.s32.totalorder %s22, 3
      %p317 = pnand %p315, %p316
      %p318 = pneg %p317
      // Predicated region
      $region53: #{tpu_custom_call.1} parent=5 // pred_check
        _
      $region54: #{tpu_custom_call.1} parent=5 // pred_check_branch
        %320 = sbr.rel (%p317) target = $region56
      $region55: #{tpu_custom_call.1} parent=5 // pred_region
        %s321 = ssub.s32 %s22, 1
        %s322 = sand.u32 %s35, 1
        %s323 = scalar_lea.sflag [#allocation3], %s322
        %s324 = sand.u32 %s35, 1
        %s325 = smul.addr %s324, 64
        %s326 = scalar_lea.vmem [#allocation2], %s325
        // Predicated region
        $region57: #{tpu_custom_call.1} parent=55 // pred_check
          %p327 = pneg %p48
        $region58: #{tpu_custom_call.1} parent=55 // pred_check_branch
          %329 = sbr.rel (%p327) target = $region60
        $region59: #{tpu_custom_call.1} parent=55 // pred_region
          %330 = dma.done %s323, 1024
        $region60: #{tpu_custom_call.1} parent=55 // pred_fallthru
          _
        // Predicated region
        $region61: #{tpu_custom_call.1} parent=55 // pred_check
          %p331 = pneg %p90
        $region62: #{tpu_custom_call.1} parent=55 // pred_check_branch
          %333 = sbr.rel (%p331) target = $region64
        $region63: #{tpu_custom_call.1} parent=55 // pred_region
          %334 = dma.done [#allocation6], 3072
        $region64: #{tpu_custom_call.1} parent=55 // pred_fallthru
          _
        %s335 = sand.u32 %s35, 1
        %s336 = scalar_lea.sflag [#allocation3], %s335
        %s337 = sand.u32 %s35, 1
        %s338 = smul.addr %s337, 64
        %s339 = scalar_lea.vmem [#allocation2], %s338
        %p340 = pneg %p48
        %p341 = pneg %p45
        %p342 = pneg %p69
        %p343 = pneg %p66
        %p344 = pneg %p90
        %p345 = pneg %p87
        %p346 = pneg %p111
        %p347 = pneg %p108
        %p348 = pneg %p132
        %p349 = pneg %p129
        %p350 = pneg %p153
        %p351 = pneg %p150
        %p352 = pneg %p174
        %p353 = pneg %p171
        %p354 = pneg %p195
        %p355 = pneg %p192
        %p356 = pneg %p216
        %p357 = pneg %p213
        %p358 = pneg %p242
        %p359 = pneg %p239
        %s360 = sand.u32 %s229, 1
        %s361 = scalar_lea.sflag [#allocation4], %s360
        %s362 = sand.u32 %s229, 1
        %s363 = smul.addr %s362, 64
        %s364 = scalar_lea.vmem [#allocation7], %s363
        %v365 = vld [vmem:[%s326] sm:$0xff]
        %v366 = vld [vmem:[%s326 + $0x8] sm:$0xff]
        %v367 = vld [vmem:[%s326 + $0x10] sm:$0xff]
        %v368 = vld [vmem:[%s326 + $0x18] sm:$0xff]
        %v369 = vld [vmem:[%s326 + $0x20] sm:$0xff]
        %v370 = vld [vmem:[%s326 + $0x28] sm:$0xff]
        %v371 = vld [vmem:[%s326 + $0x30] sm:$0xff]
        %v372 = vld [vmem:[%s326 + $0x38] sm:$0xff]
        %v373 = vld [vmem:[%s1] sm:$0x1f]
        %v374 = vlaneseq
        %v375 = vshrl.u32 %v374, 7
        %v376 = vsub.s32 0, %v375
        %v377 = vrot.slane %v373, %v376
        %v378 = vmul.f32 %v377, 0.0
        %v379 = vmul.f32 %v365, %v377
        %v380 = vmul.f32 %v366, %v377
        %v381 = vmul.f32 %v367, %v377
        %v382 = vmul.f32 %v368, %v377
        %v383 = vmul.f32 %v369, %v377
        %v384 = vmul.f32 %v370, %v377
        %v385 = vlaneseq
        %v386 = vshrl.u32 %v385, 7
        %v387 = vsub.s32 1, %v386
        %v388 = vrot.slane %v373, %v387
        %v389 = vmul.f32 %v388, 0.0
        %v390 = vmul.f32 %v365, %v388
        %v391 = vmul.f32 %v366, %v388
        %v392 = vmul.f32 %v367, %v388
        %v393 = vmul.f32 %v368, %v388
        %v394 = vmul.f32 %v369, %v388
        %v395 = vmul.f32 %v370, %v388
        %v396 = vmul.f32 %v371, %v388
        %v397 = vadd.f32 %v378, %v389
        %v398 = vadd.f32 %v378, %v390
        %v399 = vadd.f32 %v379, %v391
        %v400 = vadd.f32 %v380, %v392
        %v401 = vadd.f32 %v381, %v393
        %v402 = vadd.f32 %v382, %v394
        %v403 = vadd.f32 %v383, %v395
        %v404 = vadd.f32 %v384, %v396
        %v405 = vlaneseq
        %v406 = vshrl.u32 %v405, 7
        %v407 = vsub.s32 2, %v406
        %v408 = vrot.slane %v373, %v407
        %v409 = vmul.f32 %v365, %v408
        %v410 = vmul.f32 %v366, %v408
        %v411 = vmul.f32 %v367, %v408
        %v412 = vmul.f32 %v368, %v408
        %v413 = vmul.f32 %v369, %v408
        %v414 = vmul.f32 %v370, %v408
        %v415 = vmul.f32 %v371, %v408
        %v416 = vmul.f32 %v372, %v408
        %v417 = vadd.f32 %v397, %v409
        %v418 = vadd.f32 %v398, %v410
        %v419 = vadd.f32 %v399, %v411
        %v420 = vadd.f32 %v400, %v412
        %v421 = vadd.f32 %v401, %v413
        %v422 = vadd.f32 %v402, %v414
        %v423 = vadd.f32 %v403, %v415
        %v424 = vadd.f32 %v404, %v416
        %v425 = vlaneseq
        %v426 = vshrl.u32 %v425, 7
        %v427 = vsub.s32 3, %v426
        %v428 = vrot.slane %v373, %v427
        %v429 = vmul.f32 %v366, %v428
        %v430 = vmul.f32 %v367, %v428
        %v431 = vmul.f32 %v368, %v428
        %v432 = vmul.f32 %v369, %v428
        %v433 = vmul.f32 %v370, %v428
        %v434 = vmul.f32 %v371, %v428
        %v435 = vmul.f32 %v372, %v428
        %v436 = vmul.f32 %v428, 0.0
        %v437 = vadd.f32 %v417, %v429
        %v438 = vadd.f32 %v418, %v430
        %v439 = vadd.f32 %v419, %v431
        %v440 = vadd.f32 %v420, %v432
        %v441 = vadd.f32 %v421, %v433
        %v442 = vadd.f32 %v422, %v434
        %v443 = vadd.f32 %v423, %v435
        %v444 = vadd.f32 %v424, %v436
        %v445 = vlaneseq
        %v446 = vshrl.u32 %v445, 7
        %v447 = vsub.s32 4, %v446
        %v448 = vrot.slane %v373, %v447
        %v449 = vmul.f32 %v367, %v448
        %v450 = vmul.f32 %v368, %v448
        %v451 = vmul.f32 %v369, %v448
        %v452 = vmul.f32 %v370, %v448
        %v453 = vmul.f32 %v371, %v448
        %v454 = vmul.f32 %v372, %v448
        %v455 = vmul.f32 %v448, 0.0
        %v456 = vadd.f32 %v437, %v449
        %v457 = vadd.f32 %v438, %v450
        %v458 = vadd.f32 %v439, %v451
        %v459 = vadd.f32 %v440, %v452
        %v460 = vadd.f32 %v441, %v453
        %v461 = vadd.f32 %v442, %v454
        %v462 = vadd.f32 %v443, %v455
        %v463 = vadd.f32 %v444, %v455
        %v464 = vld [vmem:[#allocation5] sm:$0xff]
        %v465 = vld [vmem:[#allocation5 + $0x8] sm:$0xff]
        %v466 = vld [vmem:[#allocation5 + $0x10] sm:$0xff]
        %v467 = vld [vmem:[#allocation5 + $0x18] sm:$0xff]
        %v468 = vld [vmem:[#allocation5 + $0x20] sm:$0xff]
        %v469 = vld [vmem:[#allocation5 + $0x28] sm:$0xff]
        %v470 = vld [vmem:[#allocation5 + $0x30] sm:$0xff]
        %v471 = vld [vmem:[#allocation5 + $0x38] sm:$0xff]
        %s472 = scalar_lea.vmem [#allocation5], 64
        %v473 = vld [vmem:[%s472] sm:$0xff]
        %v474 = vld [vmem:[%s472 + $0x8] sm:$0xff]
        %v475 = vld [vmem:[%s472 + $0x10] sm:$0xff]
        %v476 = vld [vmem:[%s472 + $0x18] sm:$0xff]
        %v477 = vld [vmem:[%s472 + $0x20] sm:$0xff]
        %v478 = vld [vmem:[%s472 + $0x28] sm:$0xff]
        %v479 = vld [vmem:[%s472 + $0x30] sm:$0xff]
        %v480 = vld [vmem:[%s472 + $0x38] sm:$0xff]
        %vm481 = vcmask 523264
        %v483 = vsel %vm481, %v365, 0
        %v486 = vsel %vm481, %v366, 0
        %v489 = vsel %vm481, %v367, 0
        %v492 = vsel %vm481, %v368, 0
        %v495 = vsel %vm481, %v369, 0
        %v498 = vsel %vm481, %v370, 0
        %v501 = vsel %vm481, %v371, 0
        %v504 = vsel %vm481, %v372, 0
        %506 = vmatprep.subr.mxu0 0.0
        %507 = vmatpush1.msra.mxu0 %v473
        %508 = vmatprep.subr.mxu0 0.0
        %509 = vmatpush1.msra.mxu0 %v474
        %510 = vmatprep.subr.mxu0 0.0
        %511 = vmatpush1.msra.mxu0 %v475
        %512 = vmatprep.subr.mxu0 0.0
        %513 = vmatpush1.msra.mxu0 %v476
        %514 = vmatprep.subr.mxu0 0.0
        %515 = vmatpush1.msra.mxu0 %v477
        %516 = vmatprep.subr.mxu0 0.0
        %517 = vmatpush1.msra.mxu0 %v478
        %518 = vmatprep.subr.mxu0 0.0
        %519 = vmatpush1.msra.mxu0 %v479
        %520 = vmatprep.subr.mxu0 0.0
        %521 = vmatpush1.msra.mxu0 %v480
        %522 = vmatprep.subr.mxu0 0.0
        %523 = vmatpush1.msra.mxu0 0.0
        %524 = vmatprep.subr.mxu0 0.0
        %525 = vmatpush1.msra.mxu0 0.0
        %526 = vmatprep.subr.mxu0 0.0
        %527 = vmatpush1.msra.mxu0 0.0
        %528 = vmatprep.subr.mxu0 0.0
        %529 = vmatpush1.msra.mxu0 0.0
        %530 = vmatprep.subr.mxu0 0.0
        %531 = vmatpush1.msra.mxu0 0.0
        %532 = vmatprep.subr.mxu0 0.0
        %533 = vmatpush1.msra.mxu0 0.0
        %534 = vmatprep.subr.mxu0 0.0
        %535 = vmatpush1.msra.mxu0 0.0
        %536 = vmatprep.subr.mxu0 0.0
        %537 = vmatpush1.msra.mxu0 0.0
        %538 = vmatprep.subr.mxu0 0.0
        %539 = vmatpush1.msra.mxu0 0.0
        %540 = vmatprep.subr.mxu0 0.0
        %541 = vmatpush1.msra.mxu0 0.0
        %542 = vmatprep.subr.mxu0 0.0
        %543 = vmatpush1.msra.mxu0 0.0
        %544 = vmatprep.subr.mxu0 0.0
        %545 = vmatpush1.msra.mxu0 0.0
        %546 = vmatprep.subr.mxu0 0.0
        %547 = vmatpush1.msra.mxu0 0.0
        %548 = vmatprep.subr.mxu0 0.0
        %549 = vmatpush1.msra.mxu0 0.0
        %550 = vmatprep.subr.mxu0 0.0
        %551 = vmatpush1.msra.mxu0 0.0
        %552 = vmatprep.subr.mxu0 0.0
        %553 = vmatpush1.msra.mxu0 0.0
        %554 = vmatprep.subr.mxu0 0.0
        %555 = vmatpush1.msra.mxu0 0.0
        %556 = vmatprep.subr.mxu0 0.0
        %557 = vmatpush1.msra.mxu0 0.0
        %558 = vmatprep.subr.mxu0 0.0
        %559 = vmatpush1.msra.mxu0 0.0
        %560 = vmatprep.subr.mxu0 0.0
        %561 = vmatpush1.msra.mxu0 0.0
        %562 = vmatprep.subr.mxu0 0.0
        %563 = vmatpush1.msra.mxu0 0.0
        %564 = vmatprep.subr.mxu0 0.0
        %565 = vmatpush1.msra.mxu0 0.0
        %566 = vmatprep.subr.mxu0 0.0
        %567 = vmatpush1.msra.mxu0 0.0
        %568 = vmatprep.subr.mxu0 0.0
        %569 = vmatpush1.msra.mxu0 0.0
        %570 = vmatprep.mubr.f32.mxu0 0.0
        %571 = vmatmul.mubr.f32.gmra.mrb[0].mxu0 %v483
        %v572 = vpop.f32.mrb[0].mxu0
        %v573 = vadd.f32 0.0, %v572
        %v574 = vpop.f32.mrb[0].mxu0
        %575 = vmatprep.mubr.f32.mxu0 0.0
        %576 = vmatmul.mubr.f32.gmra.mrb[0].mxu0 %v486
        %v577 = vpop.f32.mrb[0].mxu0
        %v578 = vadd.f32 0.0, %v577
        %v579 = vpop.f32.mrb[0].mxu0
        %580 = vmatprep.mubr.f32.mxu0 0.0
        %581 = vmatmul.mubr.f32.gmra.mrb[0].mxu0 %v489
        %v582 = vpop.f32.mrb[0].mxu0
        %v583 = vadd.f32 0.0, %v582
        %v584 = vpop.f32.mrb[0].mxu0
        %585 = vmatprep.mubr.f32.mxu0 0.0
        %586 = vmatmul.mubr.f32.gmra.mrb[0].mxu0 %v492
        %v587 = vpop.f32.mrb[0].mxu0
        %v588 = vadd.f32 0.0, %v587
        %v589 = vpop.f32.mrb[0].mxu0
        %590 = vmatprep.mubr.f32.mxu0 0.0
        %591 = vmatmul.mubr.f32.gmra.mrb[0].mxu0 %v495
        %v592 = vpop.f32.mrb[0].mxu0
        %v593 = vadd.f32 0.0, %v592
        %v594 = vpop.f32.mrb[0].mxu0
        %595 = vmatprep.mubr.f32.mxu0 0.0
        %596 = vmatmul.mubr.f32.gmra.mrb[0].mxu0 %v498
        %v597 = vpop.f32.mrb[0].mxu0
        %v598 = vadd.f32 0.0, %v597
        %v599 = vpop.f32.mrb[0].mxu0
        %600 = vmatprep.mubr.f32.mxu0 0.0
        %601 = vmatmul.mubr.f32.gmra.mrb[0].mxu0 %v501
        %v602 = vpop.f32.mrb[0].mxu0
        %v603 = vadd.f32 0.0, %v602
        %v604 = vpop.f32.mrb[0].mxu0
        %605 = vmatprep.mubr.f32.mxu0 0.0
        %606 = vmatmul.mubr.f32.gmra.mrb[0].mxu0 %v504
        %v607 = vpop.f32.mrb[0].mxu0
        %v608 = vadd.f32 0.0, %v607
        %v609 = vpop.f32.mrb[0].mxu0
        %610 = vdwg.mxu0
        %v612 = vsel %vm481, 0.0, 0
        %614 = vmatprep.subr.mxu0 0.0
        %615 = vmatpush1.msra.mxu0 %v464
        %616 = vmatprep.subr.mxu0 0.0
        %617 = vmatpush1.msra.mxu0 %v465
        %618 = vmatprep.subr.mxu0 0.0
        %619 = vmatpush1.msra.mxu0 %v466
        %620 = vmatprep.subr.mxu0 0.0
        %621 = vmatpush1.msra.mxu0 %v467
        %622 = vmatprep.subr.mxu0 0.0
        %623 = vmatpush1.msra.mxu0 %v468
        %624 = vmatprep.subr.mxu0 0.0
        %625 = vmatpush1.msra.mxu0 %v469
        %626 = vmatprep.subr.mxu0 0.0
        %627 = vmatpush1.msra.mxu0 %v470
        %628 = vmatprep.subr.mxu0 0.0
        %629 = vmatpush1.msra.mxu0 %v471
        %630 = vmatprep.subr.mxu0 0.0
        %631 = vmatpush1.msra.mxu0 0.0
        %632 = vmatprep.subr.mxu0 0.0
        %633 = vmatpush1.msra.mxu0 0.0
        %634 = vmatprep.subr.mxu0 0.0
        %635 = vmatpush1.msra.mxu0 0.0
        %636 = vmatprep.subr.mxu0 0.0
        %637 = vmatpush1.msra.mxu0 0.0
        %638 = vmatprep.subr.mxu0 0.0
        %639 = vmatpush1.msra.mxu0 0.0
        %640 = vmatprep.subr.mxu0 0.0
        %641 = vmatpush1.msra.mxu0 0.0
        %642 = vmatprep.subr.mxu0 0.0
        %643 = vmatpush1.msra.mxu0 0.0
        %644 = vmatprep.subr.mxu0 0.0
        %645 = vmatpush1.msra.mxu0 0.0
        %646 = vmatprep.subr.mxu0 0.0
        %647 = vmatpush1.msra.mxu0 0.0
        %648 = vmatprep.subr.mxu0 0.0
        %649 = vmatpush1.msra.mxu0 0.0
        %650 = vmatprep.subr.mxu0 0.0
        %651 = vmatpush1.msra.mxu0 0.0
        %652 = vmatprep.subr.mxu0 0.0
        %653 = vmatpush1.msra.mxu0 0.0
        %654 = vmatprep.subr.mxu0 0.0
        %655 = vmatpush1.msra.mxu0 0.0
        %656 = vmatprep.subr.mxu0 0.0
        %657 = vmatpush1.msra.mxu0 0.0
        %658 = vmatprep.subr.mxu0 0.0
        %659 = vmatpush1.msra.mxu0 0.0
        %660 = vmatprep.subr.mxu0 0.0
        %661 = vmatpush1.msra.mxu0 0.0
        %662 = vmatprep.subr.mxu0 0.0
        %663 = vmatpush1.msra.mxu0 0.0
        %664 = vmatprep.subr.mxu0 0.0
        %665 = vmatpush1.msra.mxu0 0.0
        %666 = vmatprep.subr.mxu0 0.0
        %667 = vmatpush1.msra.mxu0 0.0
        %668 = vmatprep.subr.mxu0 0.0
        %669 = vmatpush1.msra.mxu0 0.0
        %670 = vmatprep.subr.mxu0 0.0
        %671 = vmatpush1.msra.mxu0 0.0
        %672 = vmatprep.subr.mxu0 0.0
        %673 = vmatpush1.msra.mxu0 0.0
        %674 = vmatprep.subr.mxu0 0.0
        %675 = vmatpush1.msra.mxu0 0.0
        %676 = vmatprep.subr.mxu0 0.0
        %677 = vmatpush1.msra.mxu0 0.0
        %678 = vmatprep.mubr.f32.mxu0 0.0
        %679 = vmatmul.mubr.f32.gmra.mrb[0].mxu0 %v612
        %v680 = vpop.f32.mrb[0].mxu0
        %v681 = vadd.f32 %v573, %v680
        %v682 = vpop.f32.mrb[0].mxu0
        %683 = vmatprep.mubr.f32.mxu0 0.0
        %684 = vmatmul.mubr.f32.gmra.mrb[0].mxu0 %v483
        %v685 = vpop.f32.mrb[0].mxu0
        %v686 = vadd.f32 %v578, %v685
        %v687 = vpop.f32.mrb[0].mxu0
        %688 = vmatprep.mubr.f32.mxu0 0.0
        %689 = vmatmul.mubr.f32.gmra.mrb[0].mxu0 %v486
        %v690 = vpop.f32.mrb[0].mxu0
        %v691 = vadd.f32 %v583, %v690
        %v692 = vpop.f32.mrb[0].mxu0
        %693 = vmatprep.mubr.f32.mxu0 0.0
        %694 = vmatmul.mubr.f32.gmra.mrb[0].mxu0 %v489
        %v695 = vpop.f32.mrb[0].mxu0
        %v696 = vadd.f32 %v588, %v695
        %v697 = vpop.f32.mrb[0].mxu0
        %698 = vmatprep.mubr.f32.mxu0 0.0
        %699 = vmatmul.mubr.f32.gmra.mrb[0].mxu0 %v492
        %v700 = vpop.f32.mrb[0].mxu0
        %v701 = vadd.f32 %v593, %v700
        %v702 = vpop.f32.mrb[0].mxu0
        %703 = vmatprep.mubr.f32.mxu0 0.0
        %704 = vmatmul.mubr.f32.gmra.mrb[0].mxu0 %v495
        %v705 = vpop.f32.mrb[0].mxu0
        %v706 = vadd.f32 %v598, %v705
        %v707 = vpop.f32.mrb[0].mxu0
        %708 = vmatprep.mubr.f32.mxu0 0.0
        %709 = vmatmul.mubr.f32.gmra.mrb[0].mxu0 %v498
        %v710 = vpop.f32.mrb[0].mxu0
        %v711 = vadd.f32 %v603, %v710
        %v712 = vpop.f32.mrb[0].mxu0
        %713 = vmatprep.mubr.f32.mxu0 0.0
        %714 = vmatmul.mubr.f32.gmra.mrb[0].mxu0 %v501
        %v715 = vpop.f32.mrb[0].mxu0
        %v716 = vadd.f32 %v608, %v715
        %v717 = vpop.f32.mrb[0].mxu0
        %718 = vdwg.mxu0
        %s719 = scalar_lea.vmem [#allocation5], 128
        %v720 = vld [vmem:[%s719] sm:$0xff]
        %v721 = vld [vmem:[%s719 + $0x8] sm:$0xff]
        %v722 = vld [vmem:[%s719 + $0x10] sm:$0xff]
        %v723 = vld [vmem:[%s719 + $0x18] sm:$0xff]
        %v724 = vld [vmem:[%s719 + $0x20] sm:$0xff]
        %v725 = vld [vmem:[%s719 + $0x28] sm:$0xff]
        %v726 = vld [vmem:[%s719 + $0x30] sm:$0xff]
        %v727 = vld [vmem:[%s719 + $0x38] sm:$0xff]
        %728 = vmatprep.subr.mxu0 0.0
        %729 = vmatpush1.msra.mxu0 %v720
        %730 = vmatprep.subr.mxu0 0.0
        %731 = vmatpush1.msra.mxu0 %v721
        %732 = vmatprep.subr.mxu0 0.0
        %733 = vmatpush1.msra.mxu0 %v722
        %734 = vmatprep.subr.mxu0 0.0
        %735 = vmatpush1.msra.mxu0 %v723
        %736 = vmatprep.subr.mxu0 0.0
        %737 = vmatpush1.msra.mxu0 %v724
        %738 = vmatprep.subr.mxu0 0.0
        %739 = vmatpush1.msra.mxu0 %v725
        %740 = vmatprep.subr.mxu0 0.0
        %741 = vmatpush1.msra.mxu0 %v726
        %742 = vmatprep.subr.mxu0 0.0
        %743 = vmatpush1.msra.mxu0 %v727
        %744 = vmatprep.subr.mxu0 0.0
        %745 = vmatpush1.msra.mxu0 0.0
        %746 = vmatprep.subr.mxu0 0.0
        %747 = vmatpush1.msra.mxu0 0.0
        %748 = vmatprep.subr.mxu0 0.0
        %749 = vmatpush1.msra.mxu0 0.0
        %750 = vmatprep.subr.mxu0 0.0
        %751 = vmatpush1.msra.mxu0 0.0
        %752 = vmatprep.subr.mxu0 0.0
        %753 = vmatpush1.msra.mxu0 0.0
        %754 = vmatprep.subr.mxu0 0.0
        %755 = vmatpush1.msra.mxu0 0.0
        %756 = vmatprep.subr.mxu0 0.0
        %757 = vmatpush1.msra.mxu0 0.0
        %758 = vmatprep.subr.mxu0 0.0
        %759 = vmatpush1.msra.mxu0 0.0
        %760 = vmatprep.subr.mxu0 0.0
        %761 = vmatpush1.msra.mxu0 0.0
        %762 = vmatprep.subr.mxu0 0.0
        %763 = vmatpush1.msra.mxu0 0.0
        %764 = vmatprep.subr.mxu0 0.0
        %765 = vmatpush1.msra.mxu0 0.0
        %766 = vmatprep.subr.mxu0 0.0
        %767 = vmatpush1.msra.mxu0 0.0
        %768 = vmatprep.subr.mxu0 0.0
        %769 = vmatpush1.msra.mxu0 0.0
        %770 = vmatprep.subr.mxu0 0.0
        %771 = vmatpush1.msra.mxu0 0.0
        %772 = vmatprep.subr.mxu0 0.0
        %773 = vmatpush1.msra.mxu0 0.0
        %774 = vmatprep.subr.mxu0 0.0
        %775 = vmatpush1.msra.mxu0 0.0
        %776 = vmatprep.subr.mxu0 0.0
        %777 = vmatpush1.msra.mxu0 0.0
        %778 = vmatprep.subr.mxu0 0.0
        %779 = vmatpush1.msra.mxu0 0.0
        %780 = vmatprep.subr.mxu0 0.0
        %781 = vmatpush1.msra.mxu0 0.0
        %782 = vmatprep.subr.mxu0 0.0
        %783 = vmatpush1.msra.mxu0 0.0
        %784 = vmatprep.subr.mxu0 0.0
        %785 = vmatpush1.msra.mxu0 0.0
        %786 = vmatprep.subr.mxu0 0.0
        %787 = vmatpush1.msra.mxu0 0.0
        %788 = vmatprep.subr.mxu0 0.0
        %789 = vmatpush1.msra.mxu0 0.0
        %790 = vmatprep.subr.mxu0 0.0
        %791 = vmatpush1.msra.mxu0 0.0
        %792 = vmatprep.mubr.f32.mxu0 0.0
        %793 = vmatmul.mubr.f32.gmra.mrb[0].mxu0 %v486
        %v794 = vpop.f32.mrb[0].mxu0
        %v795 = vadd.f32 0.0, %v794
        %v796 = vpop.f32.mrb[0].mxu0
        %797 = vmatprep.mubr.f32.mxu0 0.0
        %798 = vmatmul.mubr.f32.gmra.mrb[0].mxu0 %v489
        %v799 = vpop.f32.mrb[0].mxu0
        %v800 = vadd.f32 0.0, %v799
        %v801 = vpop.f32.mrb[0].mxu0
        %802 = vmatprep.mubr.f32.mxu0 0.0
        %803 = vmatmul.mubr.f32.gmra.mrb[0].mxu0 %v492
        %v804 = vpop.f32.mrb[0].mxu0
        %v805 = vadd.f32 0.0, %v804
        %v806 = vpop.f32.mrb[0].mxu0
        %807 = vmatprep.mubr.f32.mxu0 0.0
        %808 = vmatmul.mubr.f32.gmra.mrb[0].mxu0 %v495
        %v809 = vpop.f32.mrb[0].mxu0
        %v810 = vadd.f32 0.0, %v809
        %v811 = vpop.f32.mrb[0].mxu0
        %812 = vmatprep.mubr.f32.mxu0 0.0
        %813 = vmatmul.mubr.f32.gmra.mrb[0].mxu0 %v498
        %v814 = vpop.f32.mrb[0].mxu0
        %v815 = vadd.f32 0.0, %v814
        %v816 = vpop.f32.mrb[0].mxu0
        %817 = vmatprep.mubr.f32.mxu0 0.0
        %818 = vmatmul.mubr.f32.gmra.mrb[0].mxu0 %v501
        %v819 = vpop.f32.mrb[0].mxu0
        %v820 = vadd.f32 0.0, %v819
        %v821 = vpop.f32.mrb[0].mxu0
        %822 = vmatprep.mubr.f32.mxu0 0.0
        %823 = vmatmul.mubr.f32.gmra.mrb[0].mxu0 %v504
        %v824 = vpop.f32.mrb[0].mxu0
        %v825 = vadd.f32 0.0, %v824
        %v826 = vpop.f32.mrb[0].mxu0
        %827 = vmatprep.mubr.f32.mxu0 0.0
        %828 = vmatmul.mubr.f32.gmra.mrb[0].mxu0 %v612
        %v829 = vpop.f32.mrb[0].mxu0
        %v830 = vadd.f32 0.0, %v829
        %v831 = vpop.f32.mrb[0].mxu0
        %832 = vdwg.mxu0
        %v833 = vadd.f32 %v681, %v795
        %v834 = vadd.f32 %v686, %v800
        %v835 = vadd.f32 %v691, %v805
        %v836 = vadd.f32 %v696, %v810
        %v837 = vadd.f32 %v701, %v815
        %v838 = vadd.f32 %v706, %v820
        %v839 = vadd.f32 %v711, %v825
        %v840 = vadd.f32 %v716, %v830
        %v841 = vld [vmem:[%s3] sm:$0x1]
        %v843 = vlaneseq
        %v844 = vshrl.u32 %v843, 7
        %v845 = vsub.s32 0, %v844
        %v846 = vrot.slane %v841, %v845
        %v848 = vadd.f32 %v833, %v846
        %v849 = vadd.f32 %v834, %v846
        %v850 = vadd.f32 %v835, %v846
        %v851 = vadd.f32 %v836, %v846
        %v852 = vadd.f32 %v837, %v846
        %v853 = vadd.f32 %v838, %v846
        %v854 = vadd.f32 %v839, %v846
        %v855 = vadd.f32 %v840, %v846
        %v856 = vmax.f32 %v848, 0.0
        %v857 = vmax.f32 %v849, 0.0
        %v858 = vmax.f32 %v850, 0.0
        %v859 = vmax.f32 %v851, 0.0
        %v860 = vmax.f32 %v852, 0.0
        %v861 = vmax.f32 %v853, 0.0
        %v862 = vmax.f32 %v854, 0.0
        %v863 = vmax.f32 %v855, 0.0
        %v864 = vld [vmem:[%s4] sm:$0xff]
        %v865 = vld [vmem:[%s4 + $0x8] sm:$0xff]
        %v866 = vld [vmem:[%s4 + $0x10] sm:$0xff]
        %v867 = vld [vmem:[%s4 + $0x18] sm:$0xff]
        %v868 = vld [vmem:[%s4 + $0x20] sm:$0xff]
        %v869 = vld [vmem:[%s4 + $0x28] sm:$0xff]
        %v870 = vld [vmem:[%s4 + $0x30] sm:$0xff]
        %v871 = vld [vmem:[%s4 + $0x38] sm:$0xff]
        %v873 = vsel %vm481, %v856, 0
        %v876 = vsel %vm481, %v857, 0
        %v879 = vsel %vm481, %v858, 0
        %v882 = vsel %vm481, %v859, 0
        %v885 = vsel %vm481, %v860, 0
        %v888 = vsel %vm481, %v861, 0
        %v891 = vsel %vm481, %v862, 0
        %v894 = vsel %vm481, %v863, 0
        %896 = vmatprep.subr.mxu0 0.0
        %897 = vmatpush1.msra.mxu0 %v864
        %898 = vmatprep.subr.mxu0 0.0
        %899 = vmatpush1.msra.mxu0 %v865
        %900 = vmatprep.subr.mxu0 0.0
        %901 = vmatpush1.msra.mxu0 %v866
        %902 = vmatprep.subr.mxu0 0.0
        %903 = vmatpush1.msra.mxu0 %v867
        %904 = vmatprep.subr.mxu0 0.0
        %905 = vmatpush1.msra.mxu0 %v868
        %906 = vmatprep.subr.mxu0 0.0
        %907 = vmatpush1.msra.mxu0 %v869
        %908 = vmatprep.subr.mxu0 0.0
        %909 = vmatpush1.msra.mxu0 %v870
        %910 = vmatprep.subr.mxu0 0.0
        %911 = vmatpush1.msra.mxu0 %v871
        %912 = vmatprep.subr.mxu0 0.0
        %913 = vmatpush1.msra.mxu0 0.0
        %914 = vmatprep.subr.mxu0 0.0
        %915 = vmatpush1.msra.mxu0 0.0
        %916 = vmatprep.subr.mxu0 0.0
        %917 = vmatpush1.msra.mxu0 0.0
        %918 = vmatprep.subr.mxu0 0.0
        %919 = vmatpush1.msra.mxu0 0.0
        %920 = vmatprep.subr.mxu0 0.0
        %921 = vmatpush1.msra.mxu0 0.0
        %922 = vmatprep.subr.mxu0 0.0
        %923 = vmatpush1.msra.mxu0 0.0
        %924 = vmatprep.subr.mxu0 0.0
        %925 = vmatpush1.msra.mxu0 0.0
        %926 = vmatprep.subr.mxu0 0.0
        %927 = vmatpush1.msra.mxu0 0.0
        %928 = vmatprep.subr.mxu0 0.0
        %929 = vmatpush1.msra.mxu0 0.0
        %930 = vmatprep.subr.mxu0 0.0
        %931 = vmatpush1.msra.mxu0 0.0
        %932 = vmatprep.subr.mxu0 0.0
        %933 = vmatpush1.msra.mxu0 0.0
        %934 = vmatprep.subr.mxu0 0.0
        %935 = vmatpush1.msra.mxu0 0.0
        %936 = vmatprep.subr.mxu0 0.0
        %937 = vmatpush1.msra.mxu0 0.0
        %938 = vmatprep.subr.mxu0 0.0
        %939 = vmatpush1.msra.mxu0 0.0
        %940 = vmatprep.subr.mxu0 0.0
        %941 = vmatpush1.msra.mxu0 0.0
        %942 = vmatprep.subr.mxu0 0.0
        %943 = vmatpush1.msra.mxu0 0.0
        %944 = vmatprep.subr.mxu0 0.0
        %945 = vmatpush1.msra.mxu0 0.0
        %946 = vmatprep.subr.mxu0 0.0
        %947 = vmatpush1.msra.mxu0 0.0
        %948 = vmatprep.subr.mxu0 0.0
        %949 = vmatpush1.msra.mxu0 0.0
        %950 = vmatprep.subr.mxu0 0.0
        %951 = vmatpush1.msra.mxu0 0.0
        %952 = vmatprep.subr.mxu0 0.0
        %953 = vmatpush1.msra.mxu0 0.0
        %954 = vmatprep.subr.mxu0 0.0
        %955 = vmatpush1.msra.mxu0 0.0
        %956 = vmatprep.subr.mxu0 0.0
        %957 = vmatpush1.msra.mxu0 0.0
        %958 = vmatprep.subr.mxu0 0.0
        %959 = vmatpush1.msra.mxu0 0.0
        %960 = vmatprep.mubr.f32.mxu0 0.0
        %961 = vmatmul.mubr.f32.gmra.mrb[0].mxu0 %v873
        %v962 = vpop.f32.mrb[0].mxu0
        %v963 = vadd.f32 0.0, %v962
        %v964 = vpop.f32.mrb[0].mxu0
        %965 = vmatprep.mubr.f32.mxu0 0.0
        %966 = vmatmul.mubr.f32.gmra.mrb[0].mxu0 %v876
        %v967 = vpop.f32.mrb[0].mxu0
        %v968 = vadd.f32 0.0, %v967
        %v969 = vpop.f32.mrb[0].mxu0
        %970 = vmatprep.mubr.f32.mxu0 0.0
        %971 = vmatmul.mubr.f32.gmra.mrb[0].mxu0 %v879
        %v972 = vpop.f32.mrb[0].mxu0
        %v973 = vadd.f32 0.0, %v972
        %v974 = vpop.f32.mrb[0].mxu0
        %975 = vmatprep.mubr.f32.mxu0 0.0
        %976 = vmatmul.mubr.f32.gmra.mrb[0].mxu0 %v882
        %v977 = vpop.f32.mrb[0].mxu0
        %v978 = vadd.f32 0.0, %v977
        %v979 = vpop.f32.mrb[0].mxu0
        %980 = vmatprep.mubr.f32.mxu0 0.0
        %981 = vmatmul.mubr.f32.gmra.mrb[0].mxu0 %v885
        %v982 = vpop.f32.mrb[0].mxu0
        %v983 = vadd.f32 0.0, %v982
        %v984 = vpop.f32.mrb[0].mxu0
        %985 = vmatprep.mubr.f32.mxu0 0.0
        %986 = vmatmul.mubr.f32.gmra.mrb[0].mxu0 %v888
        %v987 = vpop.f32.mrb[0].mxu0
        %v988 = vadd.f32 0.0, %v987
        %v989 = vpop.f32.mrb[0].mxu0
        %990 = vmatprep.mubr.f32.mxu0 0.0
        %991 = vmatmul.mubr.f32.gmra.mrb[0].mxu0 %v891
        %v992 = vpop.f32.mrb[0].mxu0
        %v993 = vadd.f32 0.0, %v992
        %v994 = vpop.f32.mrb[0].mxu0
        %995 = vmatprep.mubr.f32.mxu0 0.0
        %996 = vmatmul.mubr.f32.gmra.mrb[0].mxu0 %v894
        %v997 = vpop.f32.mrb[0].mxu0
        %v998 = vadd.f32 0.0, %v997
        %v999 = vpop.f32.mrb[0].mxu0
        %1000 = vdwg.mxu0
        %v1001 = vmul.f32 %v963, 1.442695
        %v1002 = vpow.pop %v1001
        %v1003 = vmul.f32 %v968, 1.442695
        %v1004 = vpow.pop %v1003
        %v1005 = vmul.f32 %v973, 1.442695
        %v1006 = vpow.pop %v1005
        %v1007 = vmul.f32 %v978, 1.442695
        %v1008 = vpow.pop %v1007
        %v1009 = vmul.f32 %v983, 1.442695
        %v1010 = vpow.pop %v1009
        %v1011 = vmul.f32 %v988, 1.442695
        %v1012 = vpow.pop %v1011
        %v1013 = vmul.f32 %v993, 1.442695
        %v1014 = vpow.pop %v1013
        %v1015 = vmul.f32 %v998, 1.442695
        %v1016 = vpow.pop %v1015
        %v1017 = vadd.f32 %v1002, 1.0
        %v1018 = vadd.f32 %v1004, 1.0
        %v1019 = vadd.f32 %v1006, 1.0
        %v1020 = vadd.f32 %v1008, 1.0
        %v1021 = vadd.f32 %v1010, 1.0
        %v1022 = vadd.f32 %v1012, 1.0
        %v1023 = vadd.f32 %v1014, 1.0
        %v1024 = vadd.f32 %v1016, 1.0
        %v1025 = vrcp.pop %v1017
        %v1026 = vmul.f32 1.0, %v1025
        %v1027 = vrcp.pop %v1018
        %v1028 = vmul.f32 1.0, %v1027
        %v1029 = vrcp.pop %v1019
        %v1030 = vmul.f32 1.0, %v1029
        %v1031 = vrcp.pop %v1020
        %v1032 = vmul.f32 1.0, %v1031
        %v1033 = vrcp.pop %v1021
        %v1034 = vmul.f32 1.0, %v1033
        %v1035 = vrcp.pop %v1022
        %v1036 = vmul.f32 1.0, %v1035
        %v1037 = vrcp.pop %v1023
        %v1038 = vmul.f32 1.0, %v1037
        %v1039 = vrcp.pop %v1024
        %v1040 = vmul.f32 1.0, %v1039
        %v1041 = vmul.f32 %v456, %v1026
        %v1042 = vmul.f32 %v457, %v1028
        %v1043 = vmul.f32 %v458, %v1030
        %v1044 = vmul.f32 %v459, %v1032
        %v1045 = vmul.f32 %v460, %v1034
        %v1046 = vmul.f32 %v461, %v1036
        %v1047 = vmul.f32 %v462, %v1038
        %v1048 = vmul.f32 %v463, %v1040
        %v1049 = vld [vmem:[%s5] sm:$0xff]
        %v1050 = vld [vmem:[%s5 + $0x8] sm:$0xff]
        %v1051 = vld [vmem:[%s5 + $0x10] sm:$0xff]
        %v1052 = vld [vmem:[%s5 + $0x18] sm:$0xff]
        %v1053 = vld [vmem:[%s5 + $0x20] sm:$0xff]
        %v1054 = vld [vmem:[%s5 + $0x28] sm:$0xff]
        %v1055 = vld [vmem:[%s5 + $0x30] sm:$0xff]
        %v1056 = vld [vmem:[%s5 + $0x38] sm:$0xff]
        %v1057 = vld [vmem:[%s6] sm:$0x1]
        %v1059 = vlaneseq
        %v1060 = vshrl.u32 %v1059, 7
        %v1061 = vsub.s32 0, %v1060
        %v1062 = vrot.slane %v1057, %v1061
        %v1065 = vsel %vm481, %v1041, 0
        %v1068 = vsel %vm481, %v1042, 0
        %v1071 = vsel %vm481, %v1043, 0
        %v1074 = vsel %vm481, %v1044, 0
        %v1077 = vsel %vm481, %v1045, 0
        %v1080 = vsel %vm481, %v1046, 0
        %v1083 = vsel %vm481, %v1047, 0
        %v1086 = vsel %vm481, %v1048, 0
        %1088 = vmatprep.subr.mxu0 0.0
        %1089 = vmatpush1.msra.mxu0 %v1049
        %1090 = vmatprep.subr.mxu0 0.0
        %1091 = vmatpush1.msra.mxu0 %v1050
        %1092 = vmatprep.subr.mxu0 0.0
        %1093 = vmatpush1.msra.mxu0 %v1051
        %1094 = vmatprep.subr.mxu0 0.0
        %1095 = vmatpush1.msra.mxu0 %v1052
        %1096 = vmatprep.subr.mxu0 0.0
        %1097 = vmatpush1.msra.mxu0 %v1053
        %1098 = vmatprep.subr.mxu0 0.0
        %1099 = vmatpush1.msra.mxu0 %v1054
        %1100 = vmatprep.subr.mxu0 0.0
        %1101 = vmatpush1.msra.mxu0 %v1055
        %1102 = vmatprep.subr.mxu0 0.0
        %1103 = vmatpush1.msra.mxu0 %v1056
        %1104 = vmatprep.subr.mxu0 0.0
        %1105 = vmatpush1.msra.mxu0 0.0
        %1106 = vmatprep.subr.mxu0 0.0
        %1107 = vmatpush1.msra.mxu0 0.0
        %1108 = vmatprep.subr.mxu0 0.0
        %1109 = vmatpush1.msra.mxu0 0.0
        %1110 = vmatprep.subr.mxu0 0.0
        %1111 = vmatpush1.msra.mxu0 0.0
        %1112 = vmatprep.subr.mxu0 0.0
        %1113 = vmatpush1.msra.mxu0 0.0
        %1114 = vmatprep.subr.mxu0 0.0
        %1115 = vmatpush1.msra.mxu0 0.0
        %1116 = vmatprep.subr.mxu0 0.0
        %1117 = vmatpush1.msra.mxu0 0.0
        %1118 = vmatprep.subr.mxu0 0.0
        %1119 = vmatpush1.msra.mxu0 0.0
        %1120 = vmatprep.subr.mxu0 0.0
        %1121 = vmatpush1.msra.mxu0 0.0
        %1122 = vmatprep.subr.mxu0 0.0
        %1123 = vmatpush1.msra.mxu0 0.0
        %1124 = vmatprep.subr.mxu0 0.0
        %1125 = vmatpush1.msra.mxu0 0.0
        %1126 = vmatprep.subr.mxu0 0.0
        %1127 = vmatpush1.msra.mxu0 0.0
        %1128 = vmatprep.subr.mxu0 0.0
        %1129 = vmatpush1.msra.mxu0 0.0
        %1130 = vmatprep.subr.mxu0 0.0
        %1131 = vmatpush1.msra.mxu0 0.0
        %1132 = vmatprep.subr.mxu0 0.0
        %1133 = vmatpush1.msra.mxu0 0.0
        %1134 = vmatprep.subr.mxu0 0.0
        %1135 = vmatpush1.msra.mxu0 0.0
        %1136 = vmatprep.subr.mxu0 0.0
        %1137 = vmatpush1.msra.mxu0 0.0
        %1138 = vmatprep.subr.mxu0 0.0
        %1139 = vmatpush1.msra.mxu0 0.0
        %1140 = vmatprep.subr.mxu0 0.0
        %1141 = vmatpush1.msra.mxu0 0.0
        %1142 = vmatprep.subr.mxu0 0.0
        %1143 = vmatpush1.msra.mxu0 0.0
        %1144 = vmatprep.subr.mxu0 0.0
        %1145 = vmatpush1.msra.mxu0 0.0
        %1146 = vmatprep.subr.mxu0 0.0
        %1147 = vmatpush1.msra.mxu0 0.0
        %1148 = vmatprep.subr.mxu0 0.0
        %1149 = vmatpush1.msra.mxu0 0.0
        %1150 = vmatprep.subr.mxu0 0.0
        %1151 = vmatpush1.msra.mxu0 0.0
        %1152 = vmatprep.mubr.f32.mxu0 0.0
        %1153 = vmatmul.mubr.f32.gmra.mrb[0].mxu0 %v1065
        %v1154 = vpop.f32.mrb[0].mxu0
        %v1155 = vadd.f32 %v1062, %v1154
        %v1156 = vpop.f32.mrb[0].mxu0
        %1157 = vmatprep.mubr.f32.mxu0 0.0
        %1158 = vmatmul.mubr.f32.gmra.mrb[0].mxu0 %v1068
        %v1159 = vpop.f32.mrb[0].mxu0
        %v1160 = vadd.f32 %v1062, %v1159
        %v1161 = vpop.f32.mrb[0].mxu0
        %1162 = vmatprep.mubr.f32.mxu0 0.0
        %1163 = vmatmul.mubr.f32.gmra.mrb[0].mxu0 %v1071
        %v1164 = vpop.f32.mrb[0].mxu0
        %v1165 = vadd.f32 %v1062, %v1164
        %v1166 = vpop.f32.mrb[0].mxu0
        %1167 = vmatprep.mubr.f32.mxu0 0.0
        %1168 = vmatmul.mubr.f32.gmra.mrb[0].mxu0 %v1074
        %v1169 = vpop.f32.mrb[0].mxu0
        %v1170 = vadd.f32 %v1062, %v1169
        %v1171 = vpop.f32.mrb[0].mxu0
        %1172 = vmatprep.mubr.f32.mxu0 0.0
        %1173 = vmatmul.mubr.f32.gmra.mrb[0].mxu0 %v1077
        %v1174 = vpop.f32.mrb[0].mxu0
        %v1175 = vadd.f32 %v1062, %v1174
        %v1176 = vpop.f32.mrb[0].mxu0
        %1177 = vmatprep.mubr.f32.mxu0 0.0
        %1178 = vmatmul.mubr.f32.gmra.mrb[0].mxu0 %v1080
        %v1179 = vpop.f32.mrb[0].mxu0
        %v1180 = vadd.f32 %v1062, %v1179
        %v1181 = vpop.f32.mrb[0].mxu0
        %1182 = vmatprep.mubr.f32.mxu0 0.0
        %1183 = vmatmul.mubr.f32.gmra.mrb[0].mxu0 %v1083
        %v1184 = vpop.f32.mrb[0].mxu0
        %v1185 = vadd.f32 %v1062, %v1184
        %v1186 = vpop.f32.mrb[0].mxu0
        %1187 = vmatprep.mubr.f32.mxu0 0.0
        %1188 = vmatmul.mubr.f32.gmra.mrb[0].mxu0 %v1086
        %v1189 = vpop.f32.mrb[0].mxu0
        %v1190 = vadd.f32 %v1062, %v1189
        %v1191 = vpop.f32.mrb[0].mxu0
        %1192 = vdwg.mxu0
        %v1193 = vmax.f32 %v1155, 0.0
        %v1194 = vmax.f32 %v1160, 0.0
        %v1195 = vmax.f32 %v1165, 0.0
        %v1196 = vmax.f32 %v1170, 0.0
        %v1197 = vmax.f32 %v1175, 0.0
        %v1198 = vmax.f32 %v1180, 0.0
        %v1199 = vmax.f32 %v1185, 0.0
        %v1200 = vmax.f32 %v1190, 0.0
        %v1201 = vld [vmem:[%s7] sm:$0xff]
        %v1202 = vld [vmem:[%s7 + $0x8] sm:$0xff]
        %v1203 = vld [vmem:[%s7 + $0x10] sm:$0xff]
        %v1204 = vld [vmem:[%s7 + $0x18] sm:$0xff]
        %v1205 = vld [vmem:[%s8] sm:$0x1]
        %v1207 = vlaneseq
        %v1208 = vshrl.u32 %v1207, 7
        %v1209 = vsub.s32 0, %v1208
        %v1210 = vrot.slane %v1205, %v1209
        %vm1212 = vcmask 261120
        %v1214 = vsel %vm1212, %v1193, 0
        %v1217 = vsel %vm1212, %v1194, 0
        %v1220 = vsel %vm1212, %v1195, 0
        %v1223 = vsel %vm1212, %v1196, 0
        %v1226 = vsel %vm1212, %v1197, 0
        %v1229 = vsel %vm1212, %v1198, 0
        %v1232 = vsel %vm1212, %v1199, 0
        %v1235 = vsel %vm1212, %v1200, 0
        %1237 = vmatprep.subr.mxu0 0.0
        %1238 = vmatpush1.msra.mxu0 %v1201
        %1239 = vmatprep.subr.mxu0 0.0
        %1240 = vmatpush1.msra.mxu0 %v1202
        %1241 = vmatprep.subr.mxu0 0.0
        %1242 = vmatpush1.msra.mxu0 %v1203
        %1243 = vmatprep.subr.mxu0 0.0
        %1244 = vmatpush1.msra.mxu0 %v1204
        %1245 = vmatprep.subr.mxu0 0.0
        %1246 = vmatpush1.msra.mxu0 0.0
        %1247 = vmatprep.subr.mxu0 0.0
        %1248 = vmatpush1.msra.mxu0 0.0
        %1249 = vmatprep.subr.mxu0 0.0
        %1250 = vmatpush1.msra.mxu0 0.0
        %1251 = vmatprep.subr.mxu0 0.0
        %1252 = vmatpush1.msra.mxu0 0.0
        %1253 = vmatprep.subr.mxu0 0.0
        %1254 = vmatpush1.msra.mxu0 0.0
        %1255 = vmatprep.subr.mxu0 0.0
        %1256 = vmatpush1.msra.mxu0 0.0
        %1257 = vmatprep.subr.mxu0 0.0
        %1258 = vmatpush1.msra.mxu0 0.0
        %1259 = vmatprep.subr.mxu0 0.0
        %1260 = vmatpush1.msra.mxu0 0.0
        %1261 = vmatprep.subr.mxu0 0.0
        %1262 = vmatpush1.msra.mxu0 0.0
        %1263 = vmatprep.subr.mxu0 0.0
        %1264 = vmatpush1.msra.mxu0 0.0
        %1265 = vmatprep.subr.mxu0 0.0
        %1266 = vmatpush1.msra.mxu0 0.0
        %1267 = vmatprep.subr.mxu0 0.0
        %1268 = vmatpush1.msra.mxu0 0.0
        %1269 = vmatprep.subr.mxu0 0.0
        %1270 = vmatpush1.msra.mxu0 0.0
        %1271 = vmatprep.subr.mxu0 0.0
        %1272 = vmatpush1.msra.mxu0 0.0
        %1273 = vmatprep.subr.mxu0 0.0
        %1274 = vmatpush1.msra.mxu0 0.0
        %1275 = vmatprep.subr.mxu0 0.0
        %1276 = vmatpush1.msra.mxu0 0.0
        %1277 = vmatprep.subr.mxu0 0.0
        %1278 = vmatpush1.msra.mxu0 0.0
        %1279 = vmatprep.subr.mxu0 0.0
        %1280 = vmatpush1.msra.mxu0 0.0
        %1281 = vmatprep.subr.mxu0 0.0
        %1282 = vmatpush1.msra.mxu0 0.0
        %1283 = vmatprep.subr.mxu0 0.0
        %1284 = vmatpush1.msra.mxu0 0.0
        %1285 = vmatprep.subr.mxu0 0.0
        %1286 = vmatpush1.msra.mxu0 0.0
        %1287 = vmatprep.subr.mxu0 0.0
        %1288 = vmatpush1.msra.mxu0 0.0
        %1289 = vmatprep.subr.mxu0 0.0
        %1290 = vmatpush1.msra.mxu0 0.0
        %1291 = vmatprep.subr.mxu0 0.0
        %1292 = vmatpush1.msra.mxu0 0.0
        %1293 = vmatprep.subr.mxu0 0.0
        %1294 = vmatpush1.msra.mxu0 0.0
        %1295 = vmatprep.subr.mxu0 0.0
        %1296 = vmatpush1.msra.mxu0 0.0
        %1297 = vmatprep.subr.mxu0 0.0
        %1298 = vmatpush1.msra.mxu0 0.0
        %1299 = vmatprep.subr.mxu0 0.0
        %1300 = vmatpush1.msra.mxu0 0.0
        %1301 = vmatprep.mubr.f32.mxu0 0.0
        %1302 = vmatmul.mubr.f32.gmra.mrb[0].mxu0 %v1214
        %v1303 = vpop.f32.mrb[0].mxu0
        %v1304 = vadd.f32 %v1210, %v1303
        %v1305 = vpop.f32.mrb[0].mxu0
        %1306 = vmatprep.mubr.f32.mxu0 0.0
        %1307 = vmatmul.mubr.f32.gmra.mrb[0].mxu0 %v1217
        %v1308 = vpop.f32.mrb[0].mxu0
        %v1309 = vadd.f32 %v1210, %v1308
        %v1310 = vpop.f32.mrb[0].mxu0
        %1311 = vmatprep.mubr.f32.mxu0 0.0
        %1312 = vmatmul.mubr.f32.gmra.mrb[0].mxu0 %v1220
        %v1313 = vpop.f32.mrb[0].mxu0
        %v1314 = vadd.f32 %v1210, %v1313
        %v1315 = vpop.f32.mrb[0].mxu0
        %1316 = vmatprep.mubr.f32.mxu0 0.0
        %1317 = vmatmul.mubr.f32.gmra.mrb[0].mxu0 %v1223
        %v1318 = vpop.f32.mrb[0].mxu0
        %v1319 = vadd.f32 %v1210, %v1318
        %v1320 = vpop.f32.mrb[0].mxu0
        %1321 = vmatprep.mubr.f32.mxu0 0.0
        %1322 = vmatmul.mubr.f32.gmra.mrb[0].mxu0 %v1226
        %v1323 = vpop.f32.mrb[0].mxu0
        %v1324 = vadd.f32 %v1210, %v1323
        %v1325 = vpop.f32.mrb[0].mxu0
        %1326 = vmatprep.mubr.f32.mxu0 0.0
        %1327 = vmatmul.mubr.f32.gmra.mrb[0].mxu0 %v1229
        %v1328 = vpop.f32.mrb[0].mxu0
        %v1329 = vadd.f32 %v1210, %v1328
        %v1330 = vpop.f32.mrb[0].mxu0
        %1331 = vmatprep.mubr.f32.mxu0 0.0
        %1332 = vmatmul.mubr.f32.gmra.mrb[0].mxu0 %v1232
        %v1333 = vpop.f32.mrb[0].mxu0
        %v1334 = vadd.f32 %v1210, %v1333
        %v1335 = vpop.f32.mrb[0].mxu0
        %1336 = vmatprep.mubr.f32.mxu0 0.0
        %1337 = vmatmul.mubr.f32.gmra.mrb[0].mxu0 %v1235
        %v1338 = vpop.f32.mrb[0].mxu0
        %v1339 = vadd.f32 %v1210, %v1338
        %v1340 = vpop.f32.mrb[0].mxu0
        %1341 = vdwg.mxu0
        %v1342 = vmax.f32 %v1304, 0.0
        %v1343 = vmax.f32 %v1309, 0.0
        %v1344 = vmax.f32 %v1314, 0.0
        %v1345 = vmax.f32 %v1319, 0.0
        %v1346 = vmax.f32 %v1324, 0.0
        %v1347 = vmax.f32 %v1329, 0.0
        %v1348 = vmax.f32 %v1334, 0.0
        %v1349 = vmax.f32 %v1339, 0.0
        %1350 = vst.msk [vmem:[%s364] sm:$0xff] %vm1212, %v1342
        %1351 = vst.msk [vmem:[%s364 + $0x8] sm:$0xff] %vm1212, %v1343
        %1352 = vst.msk [vmem:[%s364 + $0x10] sm:$0xff] %vm1212, %v1344
        %1353 = vst.msk [vmem:[%s364 + $0x18] sm:$0xff] %vm1212, %v1345
        %1354 = vst.msk [vmem:[%s364 + $0x20] sm:$0xff] %vm1212, %v1346
        %1355 = vst.msk [vmem:[%s364 + $0x28] sm:$0xff] %vm1212, %v1347
        %1356 = vst.msk [vmem:[%s364 + $0x30] sm:$0xff] %vm1212, %v1348
        %1357 = vst.msk [vmem:[%s364 + $0x38] sm:$0xff] %vm1212, %v1349
        %s1358 = sand.u32 %s229, 1
        %s1359 = scalar_lea.sflag [#allocation4], %s1358
        %s1360 = sand.u32 %s229, 1
        %s1361 = smul.addr %s1360, 64
        %s1362 = scalar_lea.vmem [#allocation7], %s1361
        // Predicated region
        $region65: #{tpu_custom_call.1} parent=55 // pred_check
          %p1363 = pneg %p239
        $region66: #{tpu_custom_call.1} parent=55 // pred_check_branch
          %1365 = sbr.rel (%p1363) target = $region68
        $region67: #{tpu_custom_call.1} parent=55 // pred_region
          %s1367 = ssub.s32 1024, 1024
          %1368 = vsyncadd %s1359, %s1367
          %s1369 = smul.addr %s27, 128
          %s1370 = scalar_lea.hbm %s9, %s1369
          %s1371 = sshll.u32 %s1362, 4
          %s1372 = int_to_ptr.vmem [resolvable:$true] %s1371
          %1377 = dma.vmem_to_hbm [thread:$0]  %s1372, 1024, %s1370, %s1359, 128, 256, 8
        $region68: #{tpu_custom_call.1} parent=55 // pred_fallthru
          _
      $region56: #{tpu_custom_call.1} parent=5 // pred_fallthru
        _
      %p1378 = scmp.le.s32.totalorder 2, %s22
      // Predicated region
      $region69: #{tpu_custom_call.1} parent=5 // pred_check
        %p1379 = pneg %p1378
      $region70: #{tpu_custom_call.1} parent=5 // pred_check_branch
        %1381 = sbr.rel (%p1379) target = $region72
      $region71: #{tpu_custom_call.1} parent=5 // pred_region
        %s1382 = ssub.s32 %s22, 2
        // Predicated region
        $region73: #{tpu_custom_call.1} parent=71 // pred_check
          %p1383 = pneg %p245
        $region74: #{tpu_custom_call.1} parent=71 // pred_check_branch
          %1385 = sbr.rel (%p1383) target = $region76
        $region75: #{tpu_custom_call.1} parent=71 // pred_region
          %s1386 = sand.u32 %s230, 1
          %s1387 = scalar_lea.sflag [#allocation4], %s1386
          %s1388 = sand.u32 %s230, 1
          %s1389 = smul.addr %s1388, 64
          %s1390 = scalar_lea.vmem [#allocation7], %s1389
          %1391 = dma.done %s1387, 1024
        $region76: #{tpu_custom_call.1} parent=71 // pred_fallthru
          _
      $region72: #{tpu_custom_call.1} parent=5 // pred_fallthru
        _
    $region6: #{tpu_custom_call.1} parent=1 // loop_footer
      %s26 = sadd.s32 1, %s22
    $region7: #{tpu_custom_call.1} parent=1 // loop_footer_branch
      %21 = sbr.rel target = $region3
    $region8: #{tpu_custom_call.1} parent=1 // loop_exit
      _
    %1392 = vsyncpa [#allocation3], 1
    %s1393 = scalar_lea.sflag [#allocation3], 1
    %1394 = vsyncpa %s1393, 1
    %1395 = vsyncpa [#allocation6], 1
    %1396 = vsyncpa [#allocation4], 1
    %s1397 = scalar_lea.sflag [#allocation4], 1
    %1398 = vsyncpa %s1397, 1

</llo_original>
